<compile_context>
chip_gen: v7x
topology: tpu7x:2x2x1
jax: 0.10.0
libtpu: 0.0.40
codegen_flags: <defaults>
</compile_context>

<pallas_src>
import numpy as np
import jax
import jax.numpy as jnp
from jax.experimental import pallas as pl
from jax.experimental.pallas import tpu as pltpu

NUM_COLS = 12  # feature columns 0..11


def _sum_all(x):
    """Full reduction to a (1, 1) array (lane reduce, then sublane reduce)."""
    return jnp.sum(jnp.sum(x, axis=1, keepdims=True), axis=0, keepdims=True)


def _bce_with_logits(x, z):
    """Numerically stable BCE-with-logits, same formula as PyTorch."""
    return jnp.maximum(x, 0.0) - x * z + jnp.log1p(jnp.exp(-jnp.abs(x)))


def _loss_kernel(n_ref, p_ref, t_ref, o_ref,
                 l1_two_ref, l1_one_ref,
                 bce_two_ref, bce_one_ref,
                 cnt_two_ref, cnt_one_ref):
    """Streams (12, TN) tiles; vector accumulators, single final reduction.

    Accumulators (VMEM, f32):
      l1_two_ref  (12, TN): sum |p-t| per feature row, two-emitter rows
      l1_one_ref  (12, TN): sum |p-t| per feature row, one-emitter rows
      bce_two_ref (1,  TN): sum bce over class rows [0,6], two-emitter rows
      bce_one_ref (1,  TN): sum bce over class rows [0,6], one-emitter rows
      cnt_two_ref (1,  TN): count of two-emitter rows
      cnt_one_ref (1,  TN): count of one-emitter rows
    """
    i = pl.program_id(0)
    tn = p_ref.shape[1]

    @pl.when(i == 0)
    def _init():
        l1_two_ref[...] = jnp.zeros_like(l1_two_ref)
        l1_one_ref[...] = jnp.zeros_like(l1_one_ref)
        bce_two_ref[...] = jnp.zeros_like(bce_two_ref)
        bce_one_ref[...] = jnp.zeros_like(bce_one_ref)
        cnt_two_ref[...] = jnp.zeros_like(cnt_two_ref)
        cnt_one_ref[...] = jnp.zeros_like(cnt_one_ref)

    # Load the tile; upcast in-kernel (inputs may be bf16 upstream).
    p = p_ref[...].astype(jnp.float32)  # (12, TN)
    t = t_ref[...].astype(jnp.float32)  # (12, TN)

    # Global row index of each lane -> validity mask for the ragged tail.
    n_rows = n_ref[0]
    col = jax.lax.broadcasted_iota(jnp.int32, (1, tn), 1) + i * tn
    valid = col < n_rows  # (1, TN) bool

    # Emitter-count flag lives on sublane 6.
    flag = t[6:7, :]  # (1, TN)
    two_f = jnp.where(valid & (flag == 1.0), 1.0, 0.0).astype(jnp.float32)
    one_f = jnp.where(valid & (flag == 0.0), 1.0, 0.0).astype(jnp.float32)

    # L1 contributions: pure VPU elementwise, row masks deferred to epilogue.
    abs_diff = jnp.abs(p - t)                       # (12, TN)
    l1_two_ref[...] += abs_diff * two_f             # broadcast (1,TN) -> (12,TN)
    l1_one_ref[...] += abs_diff * one_f

    # BCE only on the two class rows (0 and 6) -> 2/12 of the EUP work.
    bce_cls = (_bce_with_logits(p[0:1, :], t[0:1, :])
               + _bce_with_logits(p[6:7, :], t[6:7, :]))  # (1, TN)
    bce_two_ref[...] += bce_cls * two_f
    bce_one_ref[...] += bce_cls * one_f
    cnt_two_ref[...] += two_f
    cnt_one_ref[...] += one_f

    @pl.when(i == pl.num_programs(0) - 1)
    def _finalize():
        row = jax.lax.broadcasted_iota(jnp.int32, l1_two_ref.shape, 0)
        loc10 = ((row != 0) & (row != 6)).astype(jnp.float32)   # cols [1..5,7..11]
        loc5 = ((row >= 1) & (row <= 5)).astype(jnp.float32)    # cols [1..5]

        s_l1_two = _sum_all(l1_two_ref[...] * loc10)   # (1,1)
        s_l1_one = _sum_all(l1_one_ref[...] * loc5)
        s_bce_two = _sum_all(bce_two_ref[...])
        s_bce_one = _sum_all(bce_one_ref[...])
        n2 = _sum_all(cnt_two_ref[...])
        n1 = _sum_all(cnt_one_ref[...])

        # Means (guarded: groups that are empty contribute 0, like the
        # `if .any()` branches in the PyTorch module).
        multi_loc = jnp.where(n2 > 0.0, s_l1_two / jnp.maximum(n2 * 10.0, 1.0), 0.0)
        multi_bce = jnp.where(n2 > 0.0, s_bce_two / jnp.maximum(n2 * 2.0, 1.0), 0.0)
        single_loc = jnp.where(n1 > 0.0, s_l1_one / jnp.maximum(n1 * 5.0, 1.0), 0.0)
        single_bce = jnp.where(n1 > 0.0, s_bce_one / jnp.maximum(n1 * 2.0, 1.0), 0.0)

        o_ref[...] = (single_bce + single_loc
                      + 10.0 * multi_bce + 10.0 * multi_loc)


def loss_pallas(predictions, targets, *, tn=2048):
    """Pallas implementation of extract_location Loss.forward.

    predictions, targets: (N, 12) arrays (f32 or bf16).
    tn: rows (lanes) processed per grid step; multiple of 128.
    """
    n, c = predictions.shape
    assert c == NUM_COLS and targets.shape == (n, c)

    # Lane-dense layout: features -> sublanes, rows -> lanes.
    # TODO(synk): if the producer can emit (12, N) directly, drop this transpose.
    p_t = predictions.T  # (12, N)
    t_t = targets.T

    tn = max(128, (int(tn) // 128) * 128)
    n_pad = pl.cdiv(n, tn) * tn
    pad = n_pad - n
    if pad:
        # Zero padding is fine: padded lanes are masked in-kernel via `n`.
        p_t = jnp.pad(p_t, ((0, 0), (0, pad)))
        t_t = jnp.pad(t_t, ((0, 0), (0, pad)))

    n_arr = jnp.array([n], dtype=jnp.int32)

    out = pl.pallas_call(
        _loss_kernel,
        out_shape=jax.ShapeDtypeStruct((1, 1), jnp.float32),
        grid_spec=pltpu.PrefetchScalarGridSpec(
            num_scalar_prefetch=1,
            grid=(n_pad // tn,),
            in_specs=[
                pl.BlockSpec((NUM_COLS, tn), lambda i, n_ref: (0, i)),
                pl.BlockSpec((NUM_COLS, tn), lambda i, n_ref: (0, i)),
            ],
            out_specs=pl.BlockSpec((1, 1), lambda i, n_ref: (0, 0)),
            scratch_shapes=[
                pltpu.VMEM((NUM_COLS, tn), jnp.float32),  # l1 sums, two-emitter
                pltpu.VMEM((NUM_COLS, tn), jnp.float32),  # l1 sums, one-emitter
                pltpu.VMEM((1, tn), jnp.float32),         # bce sums, two-emitter
                pltpu.VMEM((1, tn), jnp.float32),         # bce sums, one-emitter
                pltpu.VMEM((1, tn), jnp.float32),         # count two-emitter
                pltpu.VMEM((1, tn), jnp.float32),         # count one-emitter
            ],
        ),
        compiler_params=pltpu.CompilerParams(
            dimension_semantics=("arbitrary",)),
    )(n_arr, p_t, t_t)
    return out[0, 0]


def _reference_loss(p, t):
    """NumPy port of the PyTorch Loss.forward for verification."""
    p = np.asarray(p, np.float32)
    t = np.asarray(t, np.float32)
    two = t[:, 6] == 1.0
    one = t[:, 6] == 0.0

    def bce(x, z):
        return np.maximum(x, 0.0) - x * z + np.log1p(np.exp(-np.abs(x)))

    loss = 0.0
    if two.any():
        cols = [1, 2, 3, 4, 5, 7, 8, 9, 10, 11]
        m_loc = np.mean(np.abs(p[two][:, cols] - t[two][:, cols]))
        m_bce = np.mean(bce(p[two][:, [0, 6]], t[two][:, [0, 6]]))
        loss += 10.0 * m_loc + 10.0 * m_bce
    if one.any():
        cols = [1, 2, 3, 4, 5]
        s_loc = np.mean(np.abs(p[one][:, cols] - t[one][:, cols]))
        s_bce = np.mean(bce(p[one][:, [0, 6]], t[one][:, [0, 6]]))
        loss += s_loc + s_bce
    return np.float32(loss)


def _make_inputs(key, n):
    k1, k2, k3 = jax.random.split(key, 3)
    predictions = jax.random.normal(k1, (n, NUM_COLS), jnp.float32)
    targets = jax.random.uniform(k2, (n, NUM_COLS), jnp.float32)
    # col 0: binary classification target
    targets = targets.at[:, 0].set(
        (jax.random.uniform(k3, (n,)) > 0.5).astype(jnp.float32))
    # col 6: emitter-count flag (mix of one- and two-emitter rows)
    flag = (jnp.arange(n) % 3 == 0).astype(jnp.float32)
    targets = targets.at[:, 6].set(flag)
    return predictions, targets


if __name__ == "__main__":
    key = jax.random.PRNGKey(0)
    k_a, k_b = jax.random.split(key)

    # Small single-tile case.
    preds, tgts = _make_inputs(k_a, 16)
    loss = jax.block_until_ready(jax.jit(loss_pallas)(preds, tgts))
    ref = _reference_loss(preds, tgts)
    np.testing.assert_allclose(np.asarray(loss), ref, rtol=1e-5, atol=1e-5)

    # Multi-tile + ragged-tail case (grid > 1).
    preds2, tgts2 = _make_inputs(k_b, 300)
    loss2 = jax.block_until_ready(
        jax.jit(lambda a, b: loss_pallas(a, b, tn=128))(preds2, tgts2))
    ref2 = _reference_loss(preds2, tgts2)
    np.testing.assert_allclose(np.asarray(loss2), ref2, rtol=1e-5, atol=1e-5)

    print("KERNEL_OK")
</pallas_src>

<mosaic_0001>
module attributes {stable_mosaic.version = 11 : i64} {
  func.func @_loss_kernel(%arg0: i32, %arg1: memref<1xi32, #tpu.memory_space<smem>>, %arg2: memref<12x2048xf32, #tpu.memory_space<vmem>>, %arg3: memref<12x2048xf32, #tpu.memory_space<vmem>>, %arg4: memref<1x1xf32, #tpu.memory_space<vmem>>, %arg5: memref<12x2048xf32, #tpu.memory_space<vmem>>, %arg6: memref<12x2048xf32, #tpu.memory_space<vmem>>, %arg7: memref<1x2048xf32, #tpu.memory_space<vmem>>, %arg8: memref<1x2048xf32, #tpu.memory_space<vmem>>, %arg9: memref<1x2048xf32, #tpu.memory_space<vmem>>, %arg10: memref<1x2048xf32, #tpu.memory_space<vmem>>) attributes {dimension_semantics = [#tpu.dimension_semantics<arbitrary>], iteration_bounds = array<i64: 1>, scalar_prefetch = 1 : i64, scratch_operands = 6 : i64, tpu.core_type = #tpu.core_type<tc>, window_params = [{transform_indices = @transform_0, window_bounds = array<i64: 12, 2048>}, {transform_indices = @transform_1, window_bounds = array<i64: 12, 2048>}, {pipeline_mode = #tpu.pipeline_mode<synchronous>, transform_indices = @transform_2, window_bounds = array<i64: 1, 1>}]} {
    %c0_i32 = arith.constant 0 : i32
    %0 = arith.cmpi eq, %arg0, %c0_i32 : i32
    %1 = arith.extui %0 : i1 to i32
    %c0_i32_0 = arith.constant 0 : i32
    %2 = arith.cmpi ne, %1, %c0_i32_0 : i32
    scf.if %2 {
      %cst_40 = arith.constant 0.000000e+00 : f32
      %79 = vector.broadcast %cst_40 : f32 to vector<12x2048xf32>
      %c0_41 = arith.constant 0 : index
      %c0_42 = arith.constant 0 : index
      %80 = vector.load %arg5[%c0_41, %c0_42] : memref<12x2048xf32, #tpu.memory_space<vmem>>, vector<12x2048xf32>
      tpu.vector_store %arg5[%c0_41, %c0_42], %79 {strides = array<i32>} : memref<12x2048xf32, #tpu.memory_space<vmem>>, vector<12x2048xf32>,
      %cst_43 = arith.constant 0.000000e+00 : f32
      %81 = vector.broadcast %cst_43 : f32 to vector<12x2048xf32>
      %c0_44 = arith.constant 0 : index
      %c0_45 = arith.constant 0 : index
      %82 = vector.load %arg6[%c0_44, %c0_45] : memref<12x2048xf32, #tpu.memory_space<vmem>>, vector<12x2048xf32>
      tpu.vector_store %arg6[%c0_44, %c0_45], %81 {strides = array<i32>} : memref<12x2048xf32, #tpu.memory_space<vmem>>, vector<12x2048xf32>,
      %cst_46 = arith.constant 0.000000e+00 : f32
      %83 = vector.broadcast %cst_46 : f32 to vector<1x2048xf32>
      %c0_47 = arith.constant 0 : index
      %c0_48 = arith.constant 0 : index
      %84 = vector.load %arg7[%c0_47, %c0_48] : memref<1x2048xf32, #tpu.memory_space<vmem>>, vector<1x2048xf32>
      tpu.vector_store %arg7[%c0_47, %c0_48], %83 {strides = array<i32>} : memref<1x2048xf32, #tpu.memory_space<vmem>>, vector<1x2048xf32>,
      %cst_49 = arith.constant 0.000000e+00 : f32
      %85 = vector.broadcast %cst_49 : f32 to vector<1x2048xf32>
      %c0_50 = arith.constant 0 : index
      %c0_51 = arith.constant 0 : index
      %86 = vector.load %arg8[%c0_50, %c0_51] : memref<1x2048xf32, #tpu.memory_space<vmem>>, vector<1x2048xf32>
      tpu.vector_store %arg8[%c0_50, %c0_51], %85 {strides = array<i32>} : memref<1x2048xf32, #tpu.memory_space<vmem>>, vector<1x2048xf32>,
      %cst_52 = arith.constant 0.000000e+00 : f32
      %87 = vector.broadcast %cst_52 : f32 to vector<1x2048xf32>
      %c0_53 = arith.constant 0 : index
      %c0_54 = arith.constant 0 : index
      %88 = vector.load %arg9[%c0_53, %c0_54] : memref<1x2048xf32, #tpu.memory_space<vmem>>, vector<1x2048xf32>
      tpu.vector_store %arg9[%c0_53, %c0_54], %87 {strides = array<i32>} : memref<1x2048xf32, #tpu.memory_space<vmem>>, vector<1x2048xf32>,
      %cst_55 = arith.constant 0.000000e+00 : f32
      %89 = vector.broadcast %cst_55 : f32 to vector<1x2048xf32>
      %c0_56 = arith.constant 0 : index
      %c0_57 = arith.constant 0 : index
      %90 = vector.load %arg10[%c0_56, %c0_57] : memref<1x2048xf32, #tpu.memory_space<vmem>>, vector<1x2048xf32>
      tpu.vector_store %arg10[%c0_56, %c0_57], %89 {strides = array<i32>} : memref<1x2048xf32, #tpu.memory_space<vmem>>, vector<1x2048xf32>,
    } else {
    }
    %c0 = arith.constant 0 : index
    %c0_1 = arith.constant 0 : index
    %3 = vector.load %arg2[%c0, %c0_1] : memref<12x2048xf32, #tpu.memory_space<vmem>>, vector<12x2048xf32>
    %c0_2 = arith.constant 0 : index
    %c0_3 = arith.constant 0 : index
    %4 = vector.load %arg3[%c0_2, %c0_3] : memref<12x2048xf32, #tpu.memory_space<vmem>>, vector<12x2048xf32>
    %c0_4 = arith.constant 0 : index
    %5 = memref.load %arg1[%c0_4] : memref<1xi32, #tpu.memory_space<smem>>
    %6 = tpu.iota {dimensions = array<i32: 1>} : vector<1x2048xi32>
    %c2048_i32 = arith.constant 2048 : i32
    %7 = arith.muli %arg0, %c2048_i32 : i32
    %8 = vector.broadcast %7 : i32 to vector<1x2048xi32>
    %9 = arith.addi %6, %8 : vector<1x2048xi32>
    %10 = vector.broadcast %5 : i32 to vector<1x2048xi32>
    %11 = arith.cmpi slt, %9, %10 : vector<1x2048xi32>
    %12 = vector.extract_strided_slice %4 {offsets = [6, 0], sizes = [1, 2048], strides = [1, 1]} : vector<12x2048xf32> to vector<1x2048xf32>
    %cst = arith.constant 1.000000e+00 : f32
    %13 = vector.broadcast %cst : f32 to vector<1x2048xf32>
    %14 = arith.cmpf oeq, %12, %13 : vector<1x2048xf32>
    %15 = arith.andi %11, %14 : vector<1x2048xi1>
    %cst_5 = arith.constant 1.000000e+00 : f32
    %cst_6 = arith.constant 0.000000e+00 : f32
    %16 = vector.broadcast %cst_5 : f32 to vector<1x2048xf32>
    %17 = vector.broadcast %cst_6 : f32 to vector<1x2048xf32>
    %18 = arith.select %15, %16, %17 : vector<1x2048xi1>, vector<1x2048xf32>
    %cst_7 = arith.constant 0.000000e+00 : f32
    %19 = vector.broadcast %cst_7 : f32 to vector<1x2048xf32>
    %20 = arith.cmpf oeq, %12, %19 : vector<1x2048xf32>
    %21 = arith.andi %11, %20 : vector<1x2048xi1>
    %cst_8 = arith.constant 1.000000e+00 : f32
    %cst_9 = arith.constant 0.000000e+00 : f32
    %22 = vector.broadcast %cst_8 : f32 to vector<1x2048xf32>
    %23 = vector.broadcast %cst_9 : f32 to vector<1x2048xf32>
    %24 = arith.select %21, %22, %23 : vector<1x2048xi1>, vector<1x2048xf32>
    %25 = arith.subf %3, %4 : vector<12x2048xf32>
    %26 = math.absf %25 : vector<12x2048xf32>
    %c0_10 = arith.constant 0 : index
    %c0_11 = arith.constant 0 : index
    %27 = vector.load %arg5[%c0_10, %c0_11] : memref<12x2048xf32, #tpu.memory_space<vmem>>, vector<12x2048xf32>
    %28 = vector.broadcast %18 : vector<1x2048xf32> to vector<12x2048xf32>
    %29 = arith.mulf %26, %28 : vector<12x2048xf32>
    %30 = arith.addf %27, %29 : vector<12x2048xf32>
    %c0_12 = arith.constant 0 : index
    %c0_13 = arith.constant 0 : index
    %31 = vector.load %arg5[%c0_12, %c0_13] : memref<12x2048xf32, #tpu.memory_space<vmem>>, vector<12x2048xf32>
    tpu.vector_store %arg5[%c0_12, %c0_13], %30 {strides = array<i32>} : memref<12x2048xf32, #tpu.memory_space<vmem>>, vector<12x2048xf32>,
    %c0_14 = arith.constant 0 : index
    %c0_15 = arith.constant 0 : index
    %32 = vector.load %arg6[%c0_14, %c0_15] : memref<12x2048xf32, #tpu.memory_space<vmem>>, vector<12x2048xf32>
    %33 = vector.broadcast %24 : vector<1x2048xf32> to vector<12x2048xf32>
    %34 = arith.mulf %26, %33 : vector<12x2048xf32>
    %35 = arith.addf %32, %34 : vector<12x2048xf32>
    %c0_16 = arith.constant 0 : index
    %c0_17 = arith.constant 0 : index
    %36 = vector.load %arg6[%c0_16, %c0_17] : memref<12x2048xf32, #tpu.memory_space<vmem>>, vector<12x2048xf32>
    tpu.vector_store %arg6[%c0_16, %c0_17], %35 {strides = array<i32>} : memref<12x2048xf32, #tpu.memory_space<vmem>>, vector<12x2048xf32>,
    %37 = vector.extract_strided_slice %3 {offsets = [0, 0], sizes = [1, 2048], strides = [1, 1]} : vector<12x2048xf32> to vector<1x2048xf32>
    %38 = vector.extract_strided_slice %4 {offsets = [0, 0], sizes = [1, 2048], strides = [1, 1]} : vector<12x2048xf32> to vector<1x2048xf32>
    %cst_18 = arith.constant 0.000000e+00 : f32
    %39 = vector.broadcast %cst_18 : f32 to vector<1x2048xf32>
    %40 = arith.maximumf %37, %39 : vector<1x2048xf32>
    %41 = arith.mulf %37, %38 : vector<1x2048xf32>
    %42 = arith.subf %40, %41 : vector<1x2048xf32>
    %43 = math.absf %37 : vector<1x2048xf32>
    %cst_19 = arith.constant 0.000000e+00 : f32
    %44 = vector.broadcast %cst_19 : f32 to vector<1x2048xf32>
    %45 = arith.subf %44, %43 : vector<1x2048xf32>
    %46 = math.exp %45 : vector<1x2048xf32>
    %47 = math.log1p %46 : vector<1x2048xf32>
    %48 = arith.addf %42, %47 : vector<1x2048xf32>
    %49 = vector.extract_strided_slice %3 {offsets = [6, 0], sizes = [1, 2048], strides = [1, 1]} : vector<12x2048xf32> to vector<1x2048xf32>
    %50 = vector.extract_strided_slice %4 {offsets = [6, 0], sizes = [1, 2048], strides = [1, 1]} : vector<12x2048xf32> to vector<1x2048xf32>
    %cst_20 = arith.constant 0.000000e+00 : f32
    %51 = vector.broadcast %cst_20 : f32 to vector<1x2048xf32>
    %52 = arith.maximumf %49, %51 : vector<1x2048xf32>
    %53 = arith.mulf %49, %50 : vector<1x2048xf32>
    %54 = arith.subf %52, %53 : vector<1x2048xf32>
    %55 = math.absf %49 : vector<1x2048xf32>
    %cst_21 = arith.constant 0.000000e+00 : f32
    %56 = vector.broadcast %cst_21 : f32 to vector<1x2048xf32>
    %57 = arith.subf %56, %55 : vector<1x2048xf32>
    %58 = math.exp %57 : vector<1x2048xf32>
    %59 = math.log1p %58 : vector<1x2048xf32>
    %60 = arith.addf %54, %59 : vector<1x2048xf32>
    %61 = arith.addf %48, %60 : vector<1x2048xf32>
    %c0_22 = arith.constant 0 : index
    %c0_23 = arith.constant 0 : index
    %62 = vector.load %arg7[%c0_22, %c0_23] : memref<1x2048xf32, #tpu.memory_space<vmem>>, vector<1x2048xf32>
    %63 = arith.mulf %61, %18 : vector<1x2048xf32>
    %64 = arith.addf %62, %63 : vector<1x2048xf32>
    %c0_24 = arith.constant 0 : index
    %c0_25 = arith.constant 0 : index
    %65 = vector.load %arg7[%c0_24, %c0_25] : memref<1x2048xf32, #tpu.memory_space<vmem>>, vector<1x2048xf32>
    tpu.vector_store %arg7[%c0_24, %c0_25], %64 {strides = array<i32>} : memref<1x2048xf32, #tpu.memory_space<vmem>>, vector<1x2048xf32>,
    %c0_26 = arith.constant 0 : index
    %c0_27 = arith.constant 0 : index
    %66 = vector.load %arg8[%c0_26, %c0_27] : memref<1x2048xf32, #tpu.memory_space<vmem>>, vector<1x2048xf32>
    %67 = arith.mulf %61, %24 : vector<1x2048xf32>
    %68 = arith.addf %66, %67 : vector<1x2048xf32>
    %c0_28 = arith.constant 0 : index
    %c0_29 = arith.constant 0 : index
    %69 = vector.load %arg8[%c0_28, %c0_29] : memref<1x2048xf32, #tpu.memory_space<vmem>>, vector<1x2048xf32>
    tpu.vector_store %arg8[%c0_28, %c0_29], %68 {strides = array<i32>} : memref<1x2048xf32, #tpu.memory_space<vmem>>, vector<1x2048xf32>,
    %c0_30 = arith.constant 0 : index
    %c0_31 = arith.constant 0 : index
    %70 = vector.load %arg9[%c0_30, %c0_31] : memref<1x2048xf32, #tpu.memory_space<vmem>>, vector<1x2048xf32>
    %71 = arith.addf %70, %18 : vector<1x2048xf32>
    %c0_32 = arith.constant 0 : index
    %c0_33 = arith.constant 0 : index
    %72 = vector.load %arg9[%c0_32, %c0_33] : memref<1x2048xf32, #tpu.memory_space<vmem>>, vector<1x2048xf32>
    tpu.vector_store %arg9[%c0_32, %c0_33], %71 {strides = array<i32>} : memref<1x2048xf32, #tpu.memory_space<vmem>>, vector<1x2048xf32>,
    %c0_34 = arith.constant 0 : index
    %c0_35 = arith.constant 0 : index
    %73 = vector.load %arg10[%c0_34, %c0_35] : memref<1x2048xf32, #tpu.memory_space<vmem>>, vector<1x2048xf32>
    %74 = arith.addf %73, %24 : vector<1x2048xf32>
    %c0_36 = arith.constant 0 : index
    %c0_37 = arith.constant 0 : index
    %75 = vector.load %arg10[%c0_36, %c0_37] : memref<1x2048xf32, #tpu.memory_space<vmem>>, vector<1x2048xf32>
    tpu.vector_store %arg10[%c0_36, %c0_37], %74 {strides = array<i32>} : memref<1x2048xf32, #tpu.memory_space<vmem>>, vector<1x2048xf32>,
    %c0_i32_38 = arith.constant 0 : i32
    %76 = arith.cmpi eq, %arg0, %c0_i32_38 : i32
    %77 = arith.extui %76 : i1 to i32
    %c0_i32_39 = arith.constant 0 : i32
    %78 = arith.cmpi ne, %77, %c0_i32_39 : i32
    scf.if %78 {
      %79 = tpu.iota {dimensions = array<i32: 0>} : vector<12x2048xi32>
      %c0_i32_40 = arith.constant 0 : i32
      %80 = vector.broadcast %c0_i32_40 : i32 to vector<12x2048xi32>
      %81 = arith.cmpi ne, %79, %80 : vector<12x2048xi32>
      %c6_i32 = arith.constant 6 : i32
      %82 = vector.broadcast %c6_i32 : i32 to vector<12x2048xi32>
      %83 = arith.cmpi ne, %79, %82 : vector<12x2048xi32>
      %84 = arith.andi %81, %83 : vector<12x2048xi1>
      %85 = arith.extui %84 : vector<12x2048xi1> to vector<12x2048xi32>
      %86 = arith.sitofp %85 : vector<12x2048xi32> to vector<12x2048xf32>
      %c1_i32 = arith.constant 1 : i32
      %87 = vector.broadcast %c1_i32 : i32 to vector<12x2048xi32>
      %88 = arith.cmpi sge, %79, %87 : vector<12x2048xi32>
      %c5_i32 = arith.constant 5 : i32
      %89 = vector.broadcast %c5_i32 : i32 to vector<12x2048xi32>
      %90 = arith.cmpi sle, %79, %89 : vector<12x2048xi32>
      %91 = arith.andi %88, %90 : vector<12x2048xi1>
      %92 = arith.extui %91 : vector<12x2048xi1> to vector<12x2048xi32>
      %93 = arith.sitofp %92 : vector<12x2048xi32> to vector<12x2048xf32>
      %c0_41 = arith.constant 0 : index
      %c0_42 = arith.constant 0 : index
      %94 = vector.load %arg5[%c0_41, %c0_42] : memref<12x2048xf32, #tpu.memory_space<vmem>>, vector<12x2048xf32>
      %95 = arith.mulf %94, %86 : vector<12x2048xf32>
      %cst_43 = arith.constant dense<0.000000e+00> : vector<12xf32>
      %96 = vector.multi_reduction <add>, %95, %cst_43 [1] : vector<12x2048xf32> to vector<12xf32>
      %97 = vector.shape_cast %96 : vector<12xf32> to vector<12x1xf32>
      %cst_44 = arith.constant dense<0.000000e+00> : vector<1xf32>
      %98 = vector.multi_reduction <add>, %97, %cst_44 [0] : vector<12x1xf32> to vector<1xf32>
      %99 = vector.shape_cast %98 : vector<1xf32> to vector<1x1xf32>
      %c0_45 = arith.constant 0 : index
      %c0_46 = arith.constant 0 : index
      %100 = vector.load %arg6[%c0_45, %c0_46] : memref<12x2048xf32, #tpu.memory_space<vmem>>, vector<12x2048xf32>
      %101 = arith.mulf %100, %93 : vector<12x2048xf32>
      %cst_47 = arith.constant dense<0.000000e+00> : vector<12xf32>
      %102 = vector.multi_reduction <add>, %101, %cst_47 [1] : vector<12x2048xf32> to vector<12xf32>
      %103 = vector.shape_cast %102 : vector<12xf32> to vector<12x1xf32>
      %cst_48 = arith.constant dense<0.000000e+00> : vector<1xf32>
      %104 = vector.multi_reduction <add>, %103, %cst_48 [0] : vector<12x1xf32> to vector<1xf32>
      %105 = vector.shape_cast %104 : vector<1xf32> to vector<1x1xf32>
      %c0_49 = arith.constant 0 : index
      %c0_50 = arith.constant 0 : index
      %106 = vector.load %arg7[%c0_49, %c0_50] : memref<1x2048xf32, #tpu.memory_space<vmem>>, vector<1x2048xf32>
      %cst_51 = arith.constant dense<0.000000e+00> : vector<1xf32>
      %107 = vector.multi_reduction <add>, %106, %cst_51 [1] : vector<1x2048xf32> to vector<1xf32>
      %108 = vector.shape_cast %107 : vector<1xf32> to vector<1x1xf32>
      %cst_52 = arith.constant dense<0.000000e+00> : vector<1xf32>
      %109 = vector.multi_reduction <add>, %108, %cst_52 [0] : vector<1x1xf32> to vector<1xf32>
      %110 = vector.shape_cast %109 : vector<1xf32> to vector<1x1xf32>
      %c0_53 = arith.constant 0 : index
      %c0_54 = arith.constant 0 : index
      %111 = vector.load %arg8[%c0_53, %c0_54] : memref<1x2048xf32, #tpu.memory_space<vmem>>, vector<1x2048xf32>
      %cst_55 = arith.constant dense<0.000000e+00> : vector<1xf32>
      %112 = vector.multi_reduction <add>, %111, %cst_55 [1] : vector<1x2048xf32> to vector<1xf32>
      %113 = vector.shape_cast %112 : vector<1xf32> to vector<1x1xf32>
      %cst_56 = arith.constant dense<0.000000e+00> : vector<1xf32>
      %114 = vector.multi_reduction <add>, %113, %cst_56 [0] : vector<1x1xf32> to vector<1xf32>
      %115 = vector.shape_cast %114 : vector<1xf32> to vector<1x1xf32>
      %c0_57 = arith.constant 0 : index
      %c0_58 = arith.constant 0 : index
      %116 = vector.load %arg9[%c0_57, %c0_58] : memref<1x2048xf32, #tpu.memory_space<vmem>>, vector<1x2048xf32>
      %cst_59 = arith.constant dense<0.000000e+00> : vector<1xf32>
      %117 = vector.multi_reduction <add>, %116, %cst_59 [1] : vector<1x2048xf32> to vector<1xf32>
      %118 = vector.shape_cast %117 : vector<1xf32> to vector<1x1xf32>
      %cst_60 = arith.constant dense<0.000000e+00> : vector<1xf32>
      %119 = vector.multi_reduction <add>, %118, %cst_60 [0] : vector<1x1xf32> to vector<1xf32>
      %120 = vector.shape_cast %119 : vector<1xf32> to vector<1x1xf32>
      %c0_61 = arith.constant 0 : index
      %c0_62 = arith.constant 0 : index
      %121 = vector.load %arg10[%c0_61, %c0_62] : memref<1x2048xf32, #tpu.memory_space<vmem>>, vector<1x2048xf32>
      %cst_63 = arith.constant dense<0.000000e+00> : vector<1xf32>
      %122 = vector.multi_reduction <add>, %121, %cst_63 [1] : vector<1x2048xf32> to vector<1xf32>
      %123 = vector.shape_cast %122 : vector<1xf32> to vector<1x1xf32>
      %cst_64 = arith.constant dense<0.000000e+00> : vector<1xf32>
      %124 = vector.multi_reduction <add>, %123, %cst_64 [0] : vector<1x1xf32> to vector<1xf32>
      %125 = vector.shape_cast %124 : vector<1xf32> to vector<1x1xf32>
      %cst_65 = arith.constant 0.000000e+00 : f32
      %126 = vector.broadcast %cst_65 : f32 to vector<1x1xf32>
      %127 = arith.cmpf ogt, %120, %126 : vector<1x1xf32>
      %cst_66 = arith.constant 1.000000e+01 : f32
      %128 = vector.broadcast %cst_66 : f32 to vector<1x1xf32>
      %129 = arith.mulf %120, %128 : vector<1x1xf32>
      %cst_67 = arith.constant 1.000000e+00 : f32
      %130 = vector.broadcast %cst_67 : f32 to vector<1x1xf32>
      %131 = arith.maximumf %129, %130 : vector<1x1xf32>
      %132 = arith.divf %99, %131 : vector<1x1xf32>
      %cst_68 = arith.constant 0.000000e+00 : f32
      %133 = vector.broadcast %cst_68 : f32 to vector<1x1xf32>
      %134 = arith.select %127, %132, %133 : vector<1x1xi1>, vector<1x1xf32>
      %cst_69 = arith.constant 0.000000e+00 : f32
      %135 = vector.broadcast %cst_69 : f32 to vector<1x1xf32>
      %136 = arith.cmpf ogt, %120, %135 : vector<1x1xf32>
      %cst_70 = arith.constant 2.000000e+00 : f32
      %137 = vector.broadcast %cst_70 : f32 to vector<1x1xf32>
      %138 = arith.mulf %120, %137 : vector<1x1xf32>
      %cst_71 = arith.constant 1.000000e+00 : f32
      %139 = vector.broadcast %cst_71 : f32 to vector<1x1xf32>
      %140 = arith.maximumf %138, %139 : vector<1x1xf32>
      %141 = arith.divf %110, %140 : vector<1x1xf32>
      %cst_72 = arith.constant 0.000000e+00 : f32
      %142 = vector.broadcast %cst_72 : f32 to vector<1x1xf32>
      %143 = arith.select %136, %141, %142 : vector<1x1xi1>, vector<1x1xf32>
      %cst_73 = arith.constant 0.000000e+00 : f32
      %144 = vector.broadcast %cst_73 : f32 to vector<1x1xf32>
      %145 = arith.cmpf ogt, %125, %144 : vector<1x1xf32>
      %cst_74 = arith.constant 5.000000e+00 : f32
      %146 = vector.broadcast %cst_74 : f32 to vector<1x1xf32>
      %147 = arith.mulf %125, %146 : vector<1x1xf32>
      %cst_75 = arith.constant 1.000000e+00 : f32
      %148 = vector.broadcast %cst_75 : f32 to vector<1x1xf32>
      %149 = arith.maximumf %147, %148 : vector<1x1xf32>
      %150 = arith.divf %105, %149 : vector<1x1xf32>
      %cst_76 = arith.constant 0.000000e+00 : f32
      %151 = vector.broadcast %cst_76 : f32 to vector<1x1xf32>
      %152 = arith.select %145, %150, %151 : vector<1x1xi1>, vector<1x1xf32>
      %cst_77 = arith.constant 0.000000e+00 : f32
      %153 = vector.broadcast %cst_77 : f32 to vector<1x1xf32>
      %154 = arith.cmpf ogt, %125, %153 : vector<1x1xf32>
      %cst_78 = arith.constant 2.000000e+00 : f32
      %155 = vector.broadcast %cst_78 : f32 to vector<1x1xf32>
      %156 = arith.mulf %125, %155 : vector<1x1xf32>
      %cst_79 = arith.constant 1.000000e+00 : f32
      %157 = vector.broadcast %cst_79 : f32 to vector<1x1xf32>
      %158 = arith.maximumf %156, %157 : vector<1x1xf32>
      %159 = arith.divf %115, %158 : vector<1x1xf32>
      %cst_80 = arith.constant 0.000000e+00 : f32
      %160 = vector.broadcast %cst_80 : f32 to vector<1x1xf32>
      %161 = arith.select %154, %159, %160 : vector<1x1xi1>, vector<1x1xf32>
      %162 = arith.addf %161, %152 : vector<1x1xf32>
      %cst_81 = arith.constant 1.000000e+01 : f32
      %163 = vector.broadcast %cst_81 : f32 to vector<1x1xf32>
      %164 = arith.mulf %163, %143 : vector<1x1xf32>
      %165 = arith.addf %162, %164 : vector<1x1xf32>
      %cst_82 = arith.constant 1.000000e+01 : f32
      %166 = vector.broadcast %cst_82 : f32 to vector<1x1xf32>
      %167 = arith.mulf %166, %134 : vector<1x1xf32>
      %168 = arith.addf %165, %167 : vector<1x1xf32>
      %c0_83 = arith.constant 0 : index
      %c0_84 = arith.constant 0 : index
      %169 = vector.load %arg4[%c0_83, %c0_84] : memref<1x1xf32, #tpu.memory_space<vmem>>, vector<1x1xf32>
      tpu.vector_store %arg4[%c0_83, %c0_84], %168 {strides = array<i32>} : memref<1x1xf32, #tpu.memory_space<vmem>>, vector<1x1xf32>,
    } else {
    }
    return
  }
  func.func @transform_0(%arg0: i32, %arg1: memref<1xi32, #tpu.memory_space<smem>>) -> (i32, i32) {
    %c0_i32 = arith.constant 0 : i32
    %c0_i32_0 = arith.constant 0 : i32
    return %c0_i32, %arg0 : i32, i32
  }
  func.func @transform_1(%arg0: i32, %arg1: memref<1xi32, #tpu.memory_space<smem>>) -> (i32, i32) {
    %c0_i32 = arith.constant 0 : i32
    %c0_i32_0 = arith.constant 0 : i32
    return %c0_i32, %arg0 : i32, i32
  }
  func.func @transform_2(%arg0: i32, %arg1: memref<1xi32, #tpu.memory_space<smem>>) -> (i32, i32) {
    %c0_i32 = arith.constant 0 : i32
    %c0_i32_0 = arith.constant 0 : i32
    %c0_i32_1 = arith.constant 0 : i32
    return %c0_i32, %c0_i32_0 : i32, i32
  }
}

</mosaic_0001>

<llo_original>
// kernel: loss_pallas.1
$region0: #{loss_pallas.1}
  #allocation0 [shape = 'u32[]', space=smem, size = 0x4, offset = 0x4, fixed_abs, tag = 'smem constant byte address 0x4 - core index']
  #allocation1 [shape = 'u32[144,128]{1,0:T(1,128)}', space=vmem, size = 0x12000, scoped, tag = 'internal scratch']
  #allocation2 [shape = 'f32[12,2048]{1,0:T(8,128)}', space=vmem, size = 0x20000, scoped, tag = 'scratch operand']
  #allocation3 [shape = 'f32[12,2048]{1,0:T(8,128)}', space=vmem, size = 0x20000, scoped, tag = 'scratch operand']
  #allocation4 [shape = 'f32[1,2048]{1,0:T(1,128)}', space=vmem, size = 0x2000, scoped, tag = 'scratch operand']
  #allocation5 [shape = 'f32[1,2048]{1,0:T(1,128)}', space=vmem, size = 0x2000, scoped, tag = 'scratch operand']
  #allocation6 [shape = 'f32[1,2048]{1,0:T(1,128)}', space=vmem, size = 0x2000, scoped, tag = 'scratch operand']
  #allocation7 [shape = 'f32[1,2048]{1,0:T(1,128)}', space=vmem, size = 0x2000, scoped, tag = 'scratch operand']
  #allocation8 [shape = 's32[1]{0}', space=sflag, size = 0x4, scoped, tag = 'scoped memory for loss_pallas.1']
  #allocation9 [shape = 's32[1]{0:T(128)S(6)}', space=smem, size = 0x200, scoped, tag = 'prefetched SMEM operand 0']
  %s0 = inlined_call_operand.<no memory space> [shape: s32[1], index: 0, kind: input, shape index: {}]
  %s1 = inlined_call_operand.vmem [shape: f32[12,2048], index: 1, kind: input, shape index: {}]
  %s2 = inlined_call_operand.vmem [shape: f32[12,2048], index: 2, kind: input, shape index: {}]
  %s3 = inlined_call_operand.hbm [shape: f32[1,1], index: 3, kind: output, shape index: {}]
  %s4 = sld [smem:[#allocation0]]
  $region26: #{loss_pallas.1} parent=0
    _
  %s6 = ssub.s32 1, %s4
  %s7 = scalar_select 0, %s6, %s4
  %8 = sst [smem:[#allocation9]] %s0
  $region1: #{loss_pallas.1} parent=0
    #allocation10 [shape = 'u8[512]{0}', space=vmem, size = 0x400, scoped, tag = 'output window, operand 0, single buffered']
    #allocation11 [shape = 's32[1]{0}', space=sflag, size = 0x4, scoped, tag = 'scoped memory for loss_pallas.1']
    %9 = vsyncpa [#allocation11], 0
    // Predicated region
    $region2: #{loss_pallas.1} parent=1 // pred_check
      _
    $region3: #{loss_pallas.1} parent=1 // pred_check_branch
      %11 = sbr.rel (0) target = $region5
    $region4: #{loss_pallas.1} parent=1 // pred_region
      _
    $region5: #{loss_pallas.1} parent=1 // pred_fallthru
      _
    // Predicated region
    $region6: #{loss_pallas.1} parent=1 // pred_check
      _
    $region7: #{loss_pallas.1} parent=1 // pred_check_branch
      %13 = sbr.rel (0) target = $region9
    $region8: #{loss_pallas.1} parent=1 // pred_region
      _
    $region9: #{loss_pallas.1} parent=1 // pred_fallthru
      _
    %p14 = scmp.eq.s32.totalorder 0, 0
    // Predicated region
    $region10: #{loss_pallas.1} parent=1 // pred_check
      %p15 = pneg %p14
    $region11: #{loss_pallas.1} parent=1 // pred_check_branch
      %17 = sbr.rel (%p15) target = $region13
    $region12: #{loss_pallas.1} parent=1 // pred_region
      %18 = vst [vmem:[#allocation2] sm:$0xff] 0.0
      %19 = vst [vmem:[#allocation2 + $0x8] sm:$0xff] 0.0
      %20 = vst [vmem:[#allocation2 + $0x10] sm:$0xff] 0.0
      %21 = vst [vmem:[#allocation2 + $0x18] sm:$0xff] 0.0
      %22 = vst [vmem:[#allocation2 + $0x20] sm:$0xff] 0.0
      %23 = vst [vmem:[#allocation2 + $0x28] sm:$0xff] 0.0
      %24 = vst [vmem:[#allocation2 + $0x30] sm:$0xff] 0.0
      %25 = vst [vmem:[#allocation2 + $0x38] sm:$0xff] 0.0
      %26 = vst [vmem:[#allocation2 + $0x40] sm:$0xff] 0.0
      %27 = vst [vmem:[#allocation2 + $0x48] sm:$0xff] 0.0
      %28 = vst [vmem:[#allocation2 + $0x50] sm:$0xff] 0.0
      %29 = vst [vmem:[#allocation2 + $0x58] sm:$0xff] 0.0
      %30 = vst [vmem:[#allocation2 + $0x60] sm:$0xff] 0.0
      %31 = vst [vmem:[#allocation2 + $0x68] sm:$0xff] 0.0
      %32 = vst [vmem:[#allocation2 + $0x70] sm:$0xff] 0.0
      %33 = vst [vmem:[#allocation2 + $0x78] sm:$0xff] 0.0
      %34 = vst [vmem:[#allocation2 + $0x80] sm:$0xf] 0.0
      %35 = vst [vmem:[#allocation2 + $0x88] sm:$0xf] 0.0
      %36 = vst [vmem:[#allocation2 + $0x90] sm:$0xf] 0.0
      %37 = vst [vmem:[#allocation2 + $0x98] sm:$0xf] 0.0
      %38 = vst [vmem:[#allocation2 + $0xa0] sm:$0xf] 0.0
      %39 = vst [vmem:[#allocation2 + $0xa8] sm:$0xf] 0.0
      %40 = vst [vmem:[#allocation2 + $0xb0] sm:$0xf] 0.0
      %41 = vst [vmem:[#allocation2 + $0xb8] sm:$0xf] 0.0
      %42 = vst [vmem:[#allocation2 + $0xc0] sm:$0xf] 0.0
      %43 = vst [vmem:[#allocation2 + $0xc8] sm:$0xf] 0.0
      %44 = vst [vmem:[#allocation2 + $0xd0] sm:$0xf] 0.0
      %45 = vst [vmem:[#allocation2 + $0xd8] sm:$0xf] 0.0
      %46 = vst [vmem:[#allocation2 + $0xe0] sm:$0xf] 0.0
      %47 = vst [vmem:[#allocation2 + $0xe8] sm:$0xf] 0.0
      %48 = vst [vmem:[#allocation2 + $0xf0] sm:$0xf] 0.0
      %49 = vst [vmem:[#allocation2 + $0xf8] sm:$0xf] 0.0
      %50 = vst [vmem:[#allocation3] sm:$0xff] 0.0
      %51 = vst [vmem:[#allocation3 + $0x8] sm:$0xff] 0.0
      %52 = vst [vmem:[#allocation3 + $0x10] sm:$0xff] 0.0
      %53 = vst [vmem:[#allocation3 + $0x18] sm:$0xff] 0.0
      %54 = vst [vmem:[#allocation3 + $0x20] sm:$0xff] 0.0
      %55 = vst [vmem:[#allocation3 + $0x28] sm:$0xff] 0.0
      %56 = vst [vmem:[#allocation3 + $0x30] sm:$0xff] 0.0
      %57 = vst [vmem:[#allocation3 + $0x38] sm:$0xff] 0.0
      %58 = vst [vmem:[#allocation3 + $0x40] sm:$0xff] 0.0
      %59 = vst [vmem:[#allocation3 + $0x48] sm:$0xff] 0.0
      %60 = vst [vmem:[#allocation3 + $0x50] sm:$0xff] 0.0
      %61 = vst [vmem:[#allocation3 + $0x58] sm:$0xff] 0.0
      %62 = vst [vmem:[#allocation3 + $0x60] sm:$0xff] 0.0
      %63 = vst [vmem:[#allocation3 + $0x68] sm:$0xff] 0.0
      %64 = vst [vmem:[#allocation3 + $0x70] sm:$0xff] 0.0
      %65 = vst [vmem:[#allocation3 + $0x78] sm:$0xff] 0.0
      %66 = vst [vmem:[#allocation3 + $0x80] sm:$0xf] 0.0
      %67 = vst [vmem:[#allocation3 + $0x88] sm:$0xf] 0.0
      %68 = vst [vmem:[#allocation3 + $0x90] sm:$0xf] 0.0
      %69 = vst [vmem:[#allocation3 + $0x98] sm:$0xf] 0.0
      %70 = vst [vmem:[#allocation3 + $0xa0] sm:$0xf] 0.0
      %71 = vst [vmem:[#allocation3 + $0xa8] sm:$0xf] 0.0
      %72 = vst [vmem:[#allocation3 + $0xb0] sm:$0xf] 0.0
      %73 = vst [vmem:[#allocation3 + $0xb8] sm:$0xf] 0.0
      %74 = vst [vmem:[#allocation3 + $0xc0] sm:$0xf] 0.0
      %75 = vst [vmem:[#allocation3 + $0xc8] sm:$0xf] 0.0
      %76 = vst [vmem:[#allocation3 + $0xd0] sm:$0xf] 0.0
      %77 = vst [vmem:[#allocation3 + $0xd8] sm:$0xf] 0.0
      %78 = vst [vmem:[#allocation3 + $0xe0] sm:$0xf] 0.0
      %79 = vst [vmem:[#allocation3 + $0xe8] sm:$0xf] 0.0
      %80 = vst [vmem:[#allocation3 + $0xf0] sm:$0xf] 0.0
      %81 = vst [vmem:[#allocation3 + $0xf8] sm:$0xf] 0.0
      %82 = vst [vmem:[#allocation4] sm:$0xff] 0.0
      %83 = vst [vmem:[#allocation4 + $0x8] sm:$0xff] 0.0
      %84 = vst [vmem:[#allocation5] sm:$0xff] 0.0
      %85 = vst [vmem:[#allocation5 + $0x8] sm:$0xff] 0.0
      %86 = vst [vmem:[#allocation6] sm:$0xff] 0.0
      %87 = vst [vmem:[#allocation6 + $0x8] sm:$0xff] 0.0
      %88 = vst [vmem:[#allocation7] sm:$0xff] 0.0
      %89 = vst [vmem:[#allocation7 + $0x8] sm:$0xff] 0.0
    $region13: #{loss_pallas.1} parent=1 // pred_fallthru
      _
    %v90 = vld [vmem:[%s1] sm:$0xff]
    %v91 = vld [vmem:[%s1 + $0x8] sm:$0xff]
    %v92 = vld [vmem:[%s1 + $0x10] sm:$0xff]
    %v93 = vld [vmem:[%s1 + $0x18] sm:$0xff]
    %v94 = vld [vmem:[%s1 + $0x20] sm:$0xff]
    %v95 = vld [vmem:[%s1 + $0x28] sm:$0xff]
    %v96 = vld [vmem:[%s1 + $0x30] sm:$0xff]
    %v97 = vld [vmem:[%s1 + $0x38] sm:$0xff]
    %v98 = vld [vmem:[%s1 + $0x40] sm:$0xff]
    %v99 = vld [vmem:[%s1 + $0x48] sm:$0xff]
    %v100 = vld [vmem:[%s1 + $0x50] sm:$0xff]
    %v101 = vld [vmem:[%s1 + $0x58] sm:$0xff]
    %v102 = vld [vmem:[%s1 + $0x60] sm:$0xff]
    %v103 = vld [vmem:[%s1 + $0x68] sm:$0xff]
    %v104 = vld [vmem:[%s1 + $0x70] sm:$0xff]
    %v105 = vld [vmem:[%s1 + $0x78] sm:$0xff]
    %v106 = vld [vmem:[%s1 + $0x80] sm:$0xf]
    %v107 = vld [vmem:[%s1 + $0x88] sm:$0xf]
    %v108 = vld [vmem:[%s1 + $0x90] sm:$0xf]
    %v109 = vld [vmem:[%s1 + $0x98] sm:$0xf]
    %v110 = vld [vmem:[%s1 + $0xa0] sm:$0xf]
    %v111 = vld [vmem:[%s1 + $0xa8] sm:$0xf]
    %v112 = vld [vmem:[%s1 + $0xb0] sm:$0xf]
    %v113 = vld [vmem:[%s1 + $0xb8] sm:$0xf]
    %v114 = vld [vmem:[%s1 + $0xc0] sm:$0xf]
    %v115 = vld [vmem:[%s1 + $0xc8] sm:$0xf]
    %v116 = vld [vmem:[%s1 + $0xd0] sm:$0xf]
    %v117 = vld [vmem:[%s1 + $0xd8] sm:$0xf]
    %v118 = vld [vmem:[%s1 + $0xe0] sm:$0xf]
    %v119 = vld [vmem:[%s1 + $0xe8] sm:$0xf]
    %v120 = vld [vmem:[%s1 + $0xf0] sm:$0xf]
    %v121 = vld [vmem:[%s1 + $0xf8] sm:$0xf]
    %v122 = vld [vmem:[%s2] sm:$0xff]
    %v123 = vld [vmem:[%s2 + $0x8] sm:$0xff]
    %v124 = vld [vmem:[%s2 + $0x10] sm:$0xff]
    %v125 = vld [vmem:[%s2 + $0x18] sm:$0xff]
    %v126 = vld [vmem:[%s2 + $0x20] sm:$0xff]
    %v127 = vld [vmem:[%s2 + $0x28] sm:$0xff]
    %v128 = vld [vmem:[%s2 + $0x30] sm:$0xff]
    %v129 = vld [vmem:[%s2 + $0x38] sm:$0xff]
    %v130 = vld [vmem:[%s2 + $0x40] sm:$0xff]
    %v131 = vld [vmem:[%s2 + $0x48] sm:$0xff]
    %v132 = vld [vmem:[%s2 + $0x50] sm:$0xff]
    %v133 = vld [vmem:[%s2 + $0x58] sm:$0xff]
    %v134 = vld [vmem:[%s2 + $0x60] sm:$0xff]
    %v135 = vld [vmem:[%s2 + $0x68] sm:$0xff]
    %v136 = vld [vmem:[%s2 + $0x70] sm:$0xff]
    %v137 = vld [vmem:[%s2 + $0x78] sm:$0xff]
    %v138 = vld [vmem:[%s2 + $0x80] sm:$0xf]
    %v139 = vld [vmem:[%s2 + $0x88] sm:$0xf]
    %v140 = vld [vmem:[%s2 + $0x90] sm:$0xf]
    %v141 = vld [vmem:[%s2 + $0x98] sm:$0xf]
    %v142 = vld [vmem:[%s2 + $0xa0] sm:$0xf]
    %v143 = vld [vmem:[%s2 + $0xa8] sm:$0xf]
    %v144 = vld [vmem:[%s2 + $0xb0] sm:$0xf]
    %v145 = vld [vmem:[%s2 + $0xb8] sm:$0xf]
    %v146 = vld [vmem:[%s2 + $0xc0] sm:$0xf]
    %v147 = vld [vmem:[%s2 + $0xc8] sm:$0xf]
    %v148 = vld [vmem:[%s2 + $0xd0] sm:$0xf]
    %v149 = vld [vmem:[%s2 + $0xd8] sm:$0xf]
    %v150 = vld [vmem:[%s2 + $0xe0] sm:$0xf]
    %v151 = vld [vmem:[%s2 + $0xe8] sm:$0xf]
    %v152 = vld [vmem:[%s2 + $0xf0] sm:$0xf]
    %v153 = vld [vmem:[%s2 + $0xf8] sm:$0xf]
    %s154 = sld [smem:[#allocation9]]
    %v155 = vlaneseq
    %v156 = vand.u32 %v155, 127
    %v157 = vadd.s32 %v156, 128
    %v158 = vadd.s32 %v156, 256
    %v159 = vadd.s32 %v156, 384
    %v160 = vadd.s32 %v156, 512
    %v161 = vadd.s32 %v156, 640
    %v162 = vadd.s32 %v156, 768
    %v163 = vadd.s32 %v156, 896
    %v164 = vadd.s32 %v156, 1024
    %v165 = vadd.s32 %v156, 1152
    %v166 = vadd.s32 %v156, 1280
    %v167 = vadd.s32 %v156, 1408
    %v168 = vadd.s32 %v156, 1536
    %v169 = vadd.s32 %v156, 1664
    %v170 = vadd.s32 %v156, 1792
    %v171 = vadd.s32 %v156, 1920
    %s172 = smul.u32 0, 2048
    %v173 = vstv %s172
    %v174 = vadd.s32 %v156, %v173
    %v175 = vadd.s32 %v157, %v173
    %v176 = vadd.s32 %v158, %v173
    %v177 = vadd.s32 %v159, %v173
    %v178 = vadd.s32 %v160, %v173
    %v179 = vadd.s32 %v161, %v173
    %v180 = vadd.s32 %v162, %v173
    %v181 = vadd.s32 %v163, %v173
    %v182 = vadd.s32 %v164, %v173
    %v183 = vadd.s32 %v165, %v173
    %v184 = vadd.s32 %v166, %v173
    %v185 = vadd.s32 %v167, %v173
    %v186 = vadd.s32 %v168, %v173
    %v187 = vadd.s32 %v169, %v173
    %v188 = vadd.s32 %v170, %v173
    %v189 = vadd.s32 %v171, %v173
    %v190 = vstv %s154
    %vm191 = vcmp.lt.s32.totalorder %v174, %v190
    %vm192 = vcmp.lt.s32.totalorder %v175, %v190
    %vm193 = vcmp.lt.s32.totalorder %v176, %v190
    %vm194 = vcmp.lt.s32.totalorder %v177, %v190
    %vm195 = vcmp.lt.s32.totalorder %v178, %v190
    %vm196 = vcmp.lt.s32.totalorder %v179, %v190
    %vm197 = vcmp.lt.s32.totalorder %v180, %v190
    %vm198 = vcmp.lt.s32.totalorder %v181, %v190
    %vm199 = vcmp.lt.s32.totalorder %v182, %v190
    %vm200 = vcmp.lt.s32.totalorder %v183, %v190
    %vm201 = vcmp.lt.s32.totalorder %v184, %v190
    %vm202 = vcmp.lt.s32.totalorder %v185, %v190
    %vm203 = vcmp.lt.s32.totalorder %v186, %v190
    %vm204 = vcmp.lt.s32.totalorder %v187, %v190
    %vm205 = vcmp.lt.s32.totalorder %v188, %v190
    %vm206 = vcmp.lt.s32.totalorder %v189, %v190
    %vm207 = vcmp.eq.f32.partialorder %v122, 1.0
    %vm208 = vcmp.eq.f32.partialorder %v123, 1.0
    %vm209 = vcmp.eq.f32.partialorder %v124, 1.0
    %vm210 = vcmp.eq.f32.partialorder %v125, 1.0
    %vm211 = vcmp.eq.f32.partialorder %v126, 1.0
    %vm212 = vcmp.eq.f32.partialorder %v127, 1.0
    %vm213 = vcmp.eq.f32.partialorder %v128, 1.0
    %vm214 = vcmp.eq.f32.partialorder %v129, 1.0
    %vm215 = vcmp.eq.f32.partialorder %v130, 1.0
    %vm216 = vcmp.eq.f32.partialorder %v131, 1.0
    %vm217 = vcmp.eq.f32.partialorder %v132, 1.0
    %vm218 = vcmp.eq.f32.partialorder %v133, 1.0
    %vm219 = vcmp.eq.f32.partialorder %v134, 1.0
    %vm220 = vcmp.eq.f32.partialorder %v135, 1.0
    %vm221 = vcmp.eq.f32.partialorder %v136, 1.0
    %vm222 = vcmp.eq.f32.partialorder %v137, 1.0
    %vm223 = vmand %vm191, %vm207
    %vm224 = vmand %vm192, %vm208
    %vm225 = vmand %vm193, %vm209
    %vm226 = vmand %vm194, %vm210
    %vm227 = vmand %vm195, %vm211
    %vm228 = vmand %vm196, %vm212
    %vm229 = vmand %vm197, %vm213
    %vm230 = vmand %vm198, %vm214
    %vm231 = vmand %vm199, %vm215
    %vm232 = vmand %vm200, %vm216
    %vm233 = vmand %vm201, %vm217
    %vm234 = vmand %vm202, %vm218
    %vm235 = vmand %vm203, %vm219
    %vm236 = vmand %vm204, %vm220
    %vm237 = vmand %vm205, %vm221
    %vm238 = vmand %vm206, %vm222
    %v239 = vsel %vm223, 1.0, 0.0
    %v240 = vsel %vm224, 1.0, 0.0
    %v241 = vsel %vm225, 1.0, 0.0
    %v242 = vsel %vm226, 1.0, 0.0
    %v243 = vsel %vm227, 1.0, 0.0
    %v244 = vsel %vm228, 1.0, 0.0
    %v245 = vsel %vm229, 1.0, 0.0
    %v246 = vsel %vm230, 1.0, 0.0
    %v247 = vsel %vm231, 1.0, 0.0
    %v248 = vsel %vm232, 1.0, 0.0
    %v249 = vsel %vm233, 1.0, 0.0
    %v250 = vsel %vm234, 1.0, 0.0
    %v251 = vsel %vm235, 1.0, 0.0
    %v252 = vsel %vm236, 1.0, 0.0
    %v253 = vsel %vm237, 1.0, 0.0
    %v254 = vsel %vm238, 1.0, 0.0
    %vm255 = vcmp.eq.f32.partialorder %v122, 0.0
    %vm256 = vcmp.eq.f32.partialorder %v123, 0.0
    %vm257 = vcmp.eq.f32.partialorder %v124, 0.0
    %vm258 = vcmp.eq.f32.partialorder %v125, 0.0
    %vm259 = vcmp.eq.f32.partialorder %v126, 0.0
    %vm260 = vcmp.eq.f32.partialorder %v127, 0.0
    %vm261 = vcmp.eq.f32.partialorder %v128, 0.0
    %vm262 = vcmp.eq.f32.partialorder %v129, 0.0
    %vm263 = vcmp.eq.f32.partialorder %v130, 0.0
    %vm264 = vcmp.eq.f32.partialorder %v131, 0.0
    %vm265 = vcmp.eq.f32.partialorder %v132, 0.0
    %vm266 = vcmp.eq.f32.partialorder %v133, 0.0
    %vm267 = vcmp.eq.f32.partialorder %v134, 0.0
    %vm268 = vcmp.eq.f32.partialorder %v135, 0.0
    %vm269 = vcmp.eq.f32.partialorder %v136, 0.0
    %vm270 = vcmp.eq.f32.partialorder %v137, 0.0
    %vm271 = vmand %vm191, %vm255
    %vm272 = vmand %vm192, %vm256
    %vm273 = vmand %vm193, %vm257
    %vm274 = vmand %vm194, %vm258
    %vm275 = vmand %vm195, %vm259
    %vm276 = vmand %vm196, %vm260
    %vm277 = vmand %vm197, %vm261
    %vm278 = vmand %vm198, %vm262
    %vm279 = vmand %vm199, %vm263
    %vm280 = vmand %vm200, %vm264
    %vm281 = vmand %vm201, %vm265
    %vm282 = vmand %vm202, %vm266
    %vm283 = vmand %vm203, %vm267
    %vm284 = vmand %vm204, %vm268
    %vm285 = vmand %vm205, %vm269
    %vm286 = vmand %vm206, %vm270
    %v287 = vsel %vm271, 1.0, 0.0
    %v288 = vsel %vm272, 1.0, 0.0
    %v289 = vsel %vm273, 1.0, 0.0
    %v290 = vsel %vm274, 1.0, 0.0
    %v291 = vsel %vm275, 1.0, 0.0
    %v292 = vsel %vm276, 1.0, 0.0
    %v293 = vsel %vm277, 1.0, 0.0
    %v294 = vsel %vm278, 1.0, 0.0
    %v295 = vsel %vm279, 1.0, 0.0
    %v296 = vsel %vm280, 1.0, 0.0
    %v297 = vsel %vm281, 1.0, 0.0
    %v298 = vsel %vm282, 1.0, 0.0
    %v299 = vsel %vm283, 1.0, 0.0
    %v300 = vsel %vm284, 1.0, 0.0
    %v301 = vsel %vm285, 1.0, 0.0
    %v302 = vsel %vm286, 1.0, 0.0
    %v303 = vsub.f32 %v90, %v122
    %v304 = vsub.f32 %v91, %v123
    %v305 = vsub.f32 %v92, %v124
    %v306 = vsub.f32 %v93, %v125
    %v307 = vsub.f32 %v94, %v126
    %v308 = vsub.f32 %v95, %v127
    %v309 = vsub.f32 %v96, %v128
    %v310 = vsub.f32 %v97, %v129
    %v311 = vsub.f32 %v98, %v130
    %v312 = vsub.f32 %v99, %v131
    %v313 = vsub.f32 %v100, %v132
    %v314 = vsub.f32 %v101, %v133
    %v315 = vsub.f32 %v102, %v134
    %v316 = vsub.f32 %v103, %v135
    %v317 = vsub.f32 %v104, %v136
    %v318 = vsub.f32 %v105, %v137
    %v319 = vsub.f32 %v106, %v138
    %v320 = vsub.f32 %v107, %v139
    %v321 = vsub.f32 %v108, %v140
    %v322 = vsub.f32 %v109, %v141
    %v323 = vsub.f32 %v110, %v142
    %v324 = vsub.f32 %v111, %v143
    %v325 = vsub.f32 %v112, %v144
    %v326 = vsub.f32 %v113, %v145
    %v327 = vsub.f32 %v114, %v146
    %v328 = vsub.f32 %v115, %v147
    %v329 = vsub.f32 %v116, %v148
    %v330 = vsub.f32 %v117, %v149
    %v331 = vsub.f32 %v118, %v150
    %v332 = vsub.f32 %v119, %v151
    %v333 = vsub.f32 %v120, %v152
    %v334 = vsub.f32 %v121, %v153
    %v335 = vand.u32 2147483647, %v303
    %v336 = vand.u32 2147483647, %v304
    %v337 = vand.u32 2147483647, %v305
    %v338 = vand.u32 2147483647, %v306
    %v339 = vand.u32 2147483647, %v307
    %v340 = vand.u32 2147483647, %v308
    %v341 = vand.u32 2147483647, %v309
    %v342 = vand.u32 2147483647, %v310
    %v343 = vand.u32 2147483647, %v311
    %v344 = vand.u32 2147483647, %v312
    %v345 = vand.u32 2147483647, %v313
    %v346 = vand.u32 2147483647, %v314
    %v347 = vand.u32 2147483647, %v315
    %v348 = vand.u32 2147483647, %v316
    %v349 = vand.u32 2147483647, %v317
    %v350 = vand.u32 2147483647, %v318
    %v351 = vand.u32 2147483647, %v319
    %v352 = vand.u32 2147483647, %v320
    %v353 = vand.u32 2147483647, %v321
    %v354 = vand.u32 2147483647, %v322
    %v355 = vand.u32 2147483647, %v323
    %v356 = vand.u32 2147483647, %v324
    %v357 = vand.u32 2147483647, %v325
    %v358 = vand.u32 2147483647, %v326
    %v359 = vand.u32 2147483647, %v327
    %v360 = vand.u32 2147483647, %v328
    %v361 = vand.u32 2147483647, %v329
    %v362 = vand.u32 2147483647, %v330
    %v363 = vand.u32 2147483647, %v331
    %v364 = vand.u32 2147483647, %v332
    %v365 = vand.u32 2147483647, %v333
    %v366 = vand.u32 2147483647, %v334
    %v367 = vld [vmem:[#allocation2] sm:$0xff]
    %v368 = vld [vmem:[#allocation2 + $0x8] sm:$0xff]
    %v369 = vld [vmem:[#allocation2 + $0x10] sm:$0xff]
    %v370 = vld [vmem:[#allocation2 + $0x18] sm:$0xff]
    %v371 = vld [vmem:[#allocation2 + $0x20] sm:$0xff]
    %v372 = vld [vmem:[#allocation2 + $0x28] sm:$0xff]
    %v373 = vld [vmem:[#allocation2 + $0x30] sm:$0xff]
    %v374 = vld [vmem:[#allocation2 + $0x38] sm:$0xff]
    %v375 = vld [vmem:[#allocation2 + $0x40] sm:$0xff]
    %v376 = vld [vmem:[#allocation2 + $0x48] sm:$0xff]
    %v377 = vld [vmem:[#allocation2 + $0x50] sm:$0xff]
    %v378 = vld [vmem:[#allocation2 + $0x58] sm:$0xff]
    %v379 = vld [vmem:[#allocation2 + $0x60] sm:$0xff]
    %v380 = vld [vmem:[#allocation2 + $0x68] sm:$0xff]
    %v381 = vld [vmem:[#allocation2 + $0x70] sm:$0xff]
    %v382 = vld [vmem:[#allocation2 + $0x78] sm:$0xff]
    %v383 = vld [vmem:[#allocation2 + $0x80] sm:$0xf]
    %v384 = vld [vmem:[#allocation2 + $0x88] sm:$0xf]
    %v385 = vld [vmem:[#allocation2 + $0x90] sm:$0xf]
    %v386 = vld [vmem:[#allocation2 + $0x98] sm:$0xf]
    %v387 = vld [vmem:[#allocation2 + $0xa0] sm:$0xf]
    %v388 = vld [vmem:[#allocation2 + $0xa8] sm:$0xf]
    %v389 = vld [vmem:[#allocation2 + $0xb0] sm:$0xf]
    %v390 = vld [vmem:[#allocation2 + $0xb8] sm:$0xf]
    %v391 = vld [vmem:[#allocation2 + $0xc0] sm:$0xf]
    %v392 = vld [vmem:[#allocation2 + $0xc8] sm:$0xf]
    %v393 = vld [vmem:[#allocation2 + $0xd0] sm:$0xf]
    %v394 = vld [vmem:[#allocation2 + $0xd8] sm:$0xf]
    %v395 = vld [vmem:[#allocation2 + $0xe0] sm:$0xf]
    %v396 = vld [vmem:[#allocation2 + $0xe8] sm:$0xf]
    %v397 = vld [vmem:[#allocation2 + $0xf0] sm:$0xf]
    %v398 = vld [vmem:[#allocation2 + $0xf8] sm:$0xf]
    %v399 = vlaneseq
    %v400 = vshrl.u32 %v399, 7
    %v401 = vsub.s32 6, %v400
    %v402 = vrot.slane %v239, %v401
    %v403 = vlaneseq
    %v404 = vshrl.u32 %v403, 7
    %v405 = vsub.s32 6, %v404
    %v406 = vrot.slane %v240, %v405
    %v407 = vlaneseq
    %v408 = vshrl.u32 %v407, 7
    %v409 = vsub.s32 6, %v408
    %v410 = vrot.slane %v241, %v409
    %v411 = vlaneseq
    %v412 = vshrl.u32 %v411, 7
    %v413 = vsub.s32 6, %v412
    %v414 = vrot.slane %v242, %v413
    %v415 = vlaneseq
    %v416 = vshrl.u32 %v415, 7
    %v417 = vsub.s32 6, %v416
    %v418 = vrot.slane %v243, %v417
    %v419 = vlaneseq
    %v420 = vshrl.u32 %v419, 7
    %v421 = vsub.s32 6, %v420
    %v422 = vrot.slane %v244, %v421
    %v423 = vlaneseq
    %v424 = vshrl.u32 %v423, 7
    %v425 = vsub.s32 6, %v424
    %v426 = vrot.slane %v245, %v425
    %v427 = vlaneseq
    %v428 = vshrl.u32 %v427, 7
    %v429 = vsub.s32 6, %v428
    %v430 = vrot.slane %v246, %v429
    %v431 = vlaneseq
    %v432 = vshrl.u32 %v431, 7
    %v433 = vsub.s32 6, %v432
    %v434 = vrot.slane %v247, %v433
    %v435 = vlaneseq
    %v436 = vshrl.u32 %v435, 7
    %v437 = vsub.s32 6, %v436
    %v438 = vrot.slane %v248, %v437
    %v439 = vlaneseq
    %v440 = vshrl.u32 %v439, 7
    %v441 = vsub.s32 6, %v440
    %v442 = vrot.slane %v249, %v441
    %v443 = vlaneseq
    %v444 = vshrl.u32 %v443, 7
    %v445 = vsub.s32 6, %v444
    %v446 = vrot.slane %v250, %v445
    %v447 = vlaneseq
    %v448 = vshrl.u32 %v447, 7
    %v449 = vsub.s32 6, %v448
    %v450 = vrot.slane %v251, %v449
    %v451 = vlaneseq
    %v452 = vshrl.u32 %v451, 7
    %v453 = vsub.s32 6, %v452
    %v454 = vrot.slane %v252, %v453
    %v455 = vlaneseq
    %v456 = vshrl.u32 %v455, 7
    %v457 = vsub.s32 6, %v456
    %v458 = vrot.slane %v253, %v457
    %v459 = vlaneseq
    %v460 = vshrl.u32 %v459, 7
    %v461 = vsub.s32 6, %v460
    %v462 = vrot.slane %v254, %v461
    %v463 = vmul.f32 %v335, %v402
    %v464 = vmul.f32 %v336, %v406
    %v465 = vmul.f32 %v337, %v410
    %v466 = vmul.f32 %v338, %v414
    %v467 = vmul.f32 %v339, %v418
    %v468 = vmul.f32 %v340, %v422
    %v469 = vmul.f32 %v341, %v426
    %v470 = vmul.f32 %v342, %v430
    %v471 = vmul.f32 %v343, %v434
    %v472 = vmul.f32 %v344, %v438
    %v473 = vmul.f32 %v345, %v442
    %v474 = vmul.f32 %v346, %v446
    %v475 = vmul.f32 %v347, %v450
    %v476 = vmul.f32 %v348, %v454
    %v477 = vmul.f32 %v349, %v458
    %v478 = vmul.f32 %v350, %v462
    %v479 = vmul.f32 %v351, %v402
    %v480 = vmul.f32 %v352, %v406
    %v481 = vmul.f32 %v353, %v410
    %v482 = vmul.f32 %v354, %v414
    %v483 = vmul.f32 %v355, %v418
    %v484 = vmul.f32 %v356, %v422
    %v485 = vmul.f32 %v357, %v426
    %v486 = vmul.f32 %v358, %v430
    %v487 = vmul.f32 %v359, %v434
    %v488 = vmul.f32 %v360, %v438
    %v489 = vmul.f32 %v361, %v442
    %v490 = vmul.f32 %v362, %v446
    %v491 = vmul.f32 %v363, %v450
    %v492 = vmul.f32 %v364, %v454
    %v493 = vmul.f32 %v365, %v458
    %v494 = vmul.f32 %v366, %v462
    %v495 = vadd.f32 %v367, %v463
    %v496 = vadd.f32 %v368, %v464
    %v497 = vadd.f32 %v369, %v465
    %v498 = vadd.f32 %v370, %v466
    %v499 = vadd.f32 %v371, %v467
    %v500 = vadd.f32 %v372, %v468
    %v501 = vadd.f32 %v373, %v469
    %v502 = vadd.f32 %v374, %v470
    %v503 = vadd.f32 %v375, %v471
    %v504 = vadd.f32 %v376, %v472
    %v505 = vadd.f32 %v377, %v473
    %v506 = vadd.f32 %v378, %v474
    %v507 = vadd.f32 %v379, %v475
    %v508 = vadd.f32 %v380, %v476
    %v509 = vadd.f32 %v381, %v477
    %v510 = vadd.f32 %v382, %v478
    %v511 = vadd.f32 %v383, %v479
    %v512 = vadd.f32 %v384, %v480
    %v513 = vadd.f32 %v385, %v481
    %v514 = vadd.f32 %v386, %v482
    %v515 = vadd.f32 %v387, %v483
    %v516 = vadd.f32 %v388, %v484
    %v517 = vadd.f32 %v389, %v485
    %v518 = vadd.f32 %v390, %v486
    %v519 = vadd.f32 %v391, %v487
    %v520 = vadd.f32 %v392, %v488
    %v521 = vadd.f32 %v393, %v489
    %v522 = vadd.f32 %v394, %v490
    %v523 = vadd.f32 %v395, %v491
    %v524 = vadd.f32 %v396, %v492
    %v525 = vadd.f32 %v397, %v493
    %v526 = vadd.f32 %v398, %v494
    %527 = vst [vmem:[#allocation2] sm:$0xff] %v495
    %528 = vst [vmem:[#allocation2 + $0x8] sm:$0xff] %v496
    %529 = vst [vmem:[#allocation2 + $0x10] sm:$0xff] %v497
    %530 = vst [vmem:[#allocation2 + $0x18] sm:$0xff] %v498
    %531 = vst [vmem:[#allocation2 + $0x20] sm:$0xff] %v499
    %532 = vst [vmem:[#allocation2 + $0x28] sm:$0xff] %v500
    %533 = vst [vmem:[#allocation2 + $0x30] sm:$0xff] %v501
    %534 = vst [vmem:[#allocation2 + $0x38] sm:$0xff] %v502
    %535 = vst [vmem:[#allocation2 + $0x40] sm:$0xff] %v503
    %536 = vst [vmem:[#allocation2 + $0x48] sm:$0xff] %v504
    %537 = vst [vmem:[#allocation2 + $0x50] sm:$0xff] %v505
    %538 = vst [vmem:[#allocation2 + $0x58] sm:$0xff] %v506
    %539 = vst [vmem:[#allocation2 + $0x60] sm:$0xff] %v507
    %540 = vst [vmem:[#allocation2 + $0x68] sm:$0xff] %v508
    %541 = vst [vmem:[#allocation2 + $0x70] sm:$0xff] %v509
    %542 = vst [vmem:[#allocation2 + $0x78] sm:$0xff] %v510
    %543 = vst [vmem:[#allocation2 + $0x80] sm:$0xf] %v511
    %544 = vst [vmem:[#allocation2 + $0x88] sm:$0xf] %v512
    %545 = vst [vmem:[#allocation2 + $0x90] sm:$0xf] %v513
    %546 = vst [vmem:[#allocation2 + $0x98] sm:$0xf] %v514
    %547 = vst [vmem:[#allocation2 + $0xa0] sm:$0xf] %v515
    %548 = vst [vmem:[#allocation2 + $0xa8] sm:$0xf] %v516
    %549 = vst [vmem:[#allocation2 + $0xb0] sm:$0xf] %v517
    %550 = vst [vmem:[#allocation2 + $0xb8] sm:$0xf] %v518
    %551 = vst [vmem:[#allocation2 + $0xc0] sm:$0xf] %v519
    %552 = vst [vmem:[#allocation2 + $0xc8] sm:$0xf] %v520
    %553 = vst [vmem:[#allocation2 + $0xd0] sm:$0xf] %v521
    %554 = vst [vmem:[#allocation2 + $0xd8] sm:$0xf] %v522
    %555 = vst [vmem:[#allocation2 + $0xe0] sm:$0xf] %v523
    %556 = vst [vmem:[#allocation2 + $0xe8] sm:$0xf] %v524
    %557 = vst [vmem:[#allocation2 + $0xf0] sm:$0xf] %v525
    %558 = vst [vmem:[#allocation2 + $0xf8] sm:$0xf] %v526
    %v559 = vld [vmem:[#allocation3] sm:$0xff]
    %v560 = vld [vmem:[#allocation3 + $0x8] sm:$0xff]
    %v561 = vld [vmem:[#allocation3 + $0x10] sm:$0xff]
    %v562 = vld [vmem:[#allocation3 + $0x18] sm:$0xff]
    %v563 = vld [vmem:[#allocation3 + $0x20] sm:$0xff]
    %v564 = vld [vmem:[#allocation3 + $0x28] sm:$0xff]
    %v565 = vld [vmem:[#allocation3 + $0x30] sm:$0xff]
    %v566 = vld [vmem:[#allocation3 + $0x38] sm:$0xff]
    %v567 = vld [vmem:[#allocation3 + $0x40] sm:$0xff]
    %v568 = vld [vmem:[#allocation3 + $0x48] sm:$0xff]
    %v569 = vld [vmem:[#allocation3 + $0x50] sm:$0xff]
    %v570 = vld [vmem:[#allocation3 + $0x58] sm:$0xff]
    %v571 = vld [vmem:[#allocation3 + $0x60] sm:$0xff]
    %v572 = vld [vmem:[#allocation3 + $0x68] sm:$0xff]
    %v573 = vld [vmem:[#allocation3 + $0x70] sm:$0xff]
    %v574 = vld [vmem:[#allocation3 + $0x78] sm:$0xff]
    %v575 = vld [vmem:[#allocation3 + $0x80] sm:$0xf]
    %v576 = vld [vmem:[#allocation3 + $0x88] sm:$0xf]
    %v577 = vld [vmem:[#allocation3 + $0x90] sm:$0xf]
    %v578 = vld [vmem:[#allocation3 + $0x98] sm:$0xf]
    %v579 = vld [vmem:[#allocation3 + $0xa0] sm:$0xf]
    %v580 = vld [vmem:[#allocation3 + $0xa8] sm:$0xf]
    %v581 = vld [vmem:[#allocation3 + $0xb0] sm:$0xf]
    %v582 = vld [vmem:[#allocation3 + $0xb8] sm:$0xf]
    %v583 = vld [vmem:[#allocation3 + $0xc0] sm:$0xf]
    %v584 = vld [vmem:[#allocation3 + $0xc8] sm:$0xf]
    %v585 = vld [vmem:[#allocation3 + $0xd0] sm:$0xf]
    %v586 = vld [vmem:[#allocation3 + $0xd8] sm:$0xf]
    %v587 = vld [vmem:[#allocation3 + $0xe0] sm:$0xf]
    %v588 = vld [vmem:[#allocation3 + $0xe8] sm:$0xf]
    %v589 = vld [vmem:[#allocation3 + $0xf0] sm:$0xf]
    %v590 = vld [vmem:[#allocation3 + $0xf8] sm:$0xf]
    %v591 = vlaneseq
    %v592 = vshrl.u32 %v591, 7
    %v593 = vsub.s32 6, %v592
    %v594 = vrot.slane %v287, %v593
    %v595 = vlaneseq
    %v596 = vshrl.u32 %v595, 7
    %v597 = vsub.s32 6, %v596
    %v598 = vrot.slane %v288, %v597
    %v599 = vlaneseq
    %v600 = vshrl.u32 %v599, 7
    %v601 = vsub.s32 6, %v600
    %v602 = vrot.slane %v289, %v601
    %v603 = vlaneseq
    %v604 = vshrl.u32 %v603, 7
    %v605 = vsub.s32 6, %v604
    %v606 = vrot.slane %v290, %v605
    %v607 = vlaneseq
    %v608 = vshrl.u32 %v607, 7
    %v609 = vsub.s32 6, %v608
    %v610 = vrot.slane %v291, %v609
    %v611 = vlaneseq
    %v612 = vshrl.u32 %v611, 7
    %v613 = vsub.s32 6, %v612
    %v614 = vrot.slane %v292, %v613
    %v615 = vlaneseq
    %v616 = vshrl.u32 %v615, 7
    %v617 = vsub.s32 6, %v616
    %v618 = vrot.slane %v293, %v617
    %v619 = vlaneseq
    %v620 = vshrl.u32 %v619, 7
    %v621 = vsub.s32 6, %v620
    %v622 = vrot.slane %v294, %v621
    %v623 = vlaneseq
    %v624 = vshrl.u32 %v623, 7
    %v625 = vsub.s32 6, %v624
    %v626 = vrot.slane %v295, %v625
    %v627 = vlaneseq
    %v628 = vshrl.u32 %v627, 7
    %v629 = vsub.s32 6, %v628
    %v630 = vrot.slane %v296, %v629
    %v631 = vlaneseq
    %v632 = vshrl.u32 %v631, 7
    %v633 = vsub.s32 6, %v632
    %v634 = vrot.slane %v297, %v633
    %v635 = vlaneseq
    %v636 = vshrl.u32 %v635, 7
    %v637 = vsub.s32 6, %v636
    %v638 = vrot.slane %v298, %v637
    %v639 = vlaneseq
    %v640 = vshrl.u32 %v639, 7
    %v641 = vsub.s32 6, %v640
    %v642 = vrot.slane %v299, %v641
    %v643 = vlaneseq
    %v644 = vshrl.u32 %v643, 7
    %v645 = vsub.s32 6, %v644
    %v646 = vrot.slane %v300, %v645
    %v647 = vlaneseq
    %v648 = vshrl.u32 %v647, 7
    %v649 = vsub.s32 6, %v648
    %v650 = vrot.slane %v301, %v649
    %v651 = vlaneseq
    %v652 = vshrl.u32 %v651, 7
    %v653 = vsub.s32 6, %v652
    %v654 = vrot.slane %v302, %v653
    %v655 = vmul.f32 %v335, %v594
    %v656 = vmul.f32 %v336, %v598
    %v657 = vmul.f32 %v337, %v602
    %v658 = vmul.f32 %v338, %v606
    %v659 = vmul.f32 %v339, %v610
    %v660 = vmul.f32 %v340, %v614
    %v661 = vmul.f32 %v341, %v618
    %v662 = vmul.f32 %v342, %v622
    %v663 = vmul.f32 %v343, %v626
    %v664 = vmul.f32 %v344, %v630
    %v665 = vmul.f32 %v345, %v634
    %v666 = vmul.f32 %v346, %v638
    %v667 = vmul.f32 %v347, %v642
    %v668 = vmul.f32 %v348, %v646
    %v669 = vmul.f32 %v349, %v650
    %v670 = vmul.f32 %v350, %v654
    %v671 = vmul.f32 %v351, %v594
    %v672 = vmul.f32 %v352, %v598
    %v673 = vmul.f32 %v353, %v602
    %v674 = vmul.f32 %v354, %v606
    %v675 = vmul.f32 %v355, %v610
    %v676 = vmul.f32 %v356, %v614
    %v677 = vmul.f32 %v357, %v618
    %v678 = vmul.f32 %v358, %v622
    %v679 = vmul.f32 %v359, %v626
    %v680 = vmul.f32 %v360, %v630
    %v681 = vmul.f32 %v361, %v634
    %v682 = vmul.f32 %v362, %v638
    %v683 = vmul.f32 %v363, %v642
    %v684 = vmul.f32 %v364, %v646
    %v685 = vmul.f32 %v365, %v650
    %v686 = vmul.f32 %v366, %v654
    %v687 = vadd.f32 %v559, %v655
    %v688 = vadd.f32 %v560, %v656
    %v689 = vadd.f32 %v561, %v657
    %v690 = vadd.f32 %v562, %v658
    %v691 = vadd.f32 %v563, %v659
    %v692 = vadd.f32 %v564, %v660
    %v693 = vadd.f32 %v565, %v661
    %v694 = vadd.f32 %v566, %v662
    %v695 = vadd.f32 %v567, %v663
    %v696 = vadd.f32 %v568, %v664
    %v697 = vadd.f32 %v569, %v665
    %v698 = vadd.f32 %v570, %v666
    %v699 = vadd.f32 %v571, %v667
    %v700 = vadd.f32 %v572, %v668
    %v701 = vadd.f32 %v573, %v669
    %v702 = vadd.f32 %v574, %v670
    %v703 = vadd.f32 %v575, %v671
    %v704 = vadd.f32 %v576, %v672
    %v705 = vadd.f32 %v577, %v673
    %v706 = vadd.f32 %v578, %v674
    %v707 = vadd.f32 %v579, %v675
    %v708 = vadd.f32 %v580, %v676
    %v709 = vadd.f32 %v581, %v677
    %v710 = vadd.f32 %v582, %v678
    %v711 = vadd.f32 %v583, %v679
    %v712 = vadd.f32 %v584, %v680
    %v713 = vadd.f32 %v585, %v681
    %v714 = vadd.f32 %v586, %v682
    %v715 = vadd.f32 %v587, %v683
    %v716 = vadd.f32 %v588, %v684
    %v717 = vadd.f32 %v589, %v685
    %v718 = vadd.f32 %v590, %v686
    %719 = vst [vmem:[#allocation3] sm:$0xff] %v687
    %720 = vst [vmem:[#allocation3 + $0x8] sm:$0xff] %v688
    %721 = vst [vmem:[#allocation3 + $0x10] sm:$0xff] %v689
    %722 = vst [vmem:[#allocation3 + $0x18] sm:$0xff] %v690
    %723 = vst [vmem:[#allocation3 + $0x20] sm:$0xff] %v691
    %724 = vst [vmem:[#allocation3 + $0x28] sm:$0xff] %v692
    %725 = vst [vmem:[#allocation3 + $0x30] sm:$0xff] %v693
    %726 = vst [vmem:[#allocation3 + $0x38] sm:$0xff] %v694
    %727 = vst [vmem:[#allocation3 + $0x40] sm:$0xff] %v695
    %728 = vst [vmem:[#allocation3 + $0x48] sm:$0xff] %v696
    %729 = vst [vmem:[#allocation3 + $0x50] sm:$0xff] %v697
    %730 = vst [vmem:[#allocation3 + $0x58] sm:$0xff] %v698
    %731 = vst [vmem:[#allocation3 + $0x60] sm:$0xff] %v699
    %732 = vst [vmem:[#allocation3 + $0x68] sm:$0xff] %v700
    %733 = vst [vmem:[#allocation3 + $0x70] sm:$0xff] %v701
    %734 = vst [vmem:[#allocation3 + $0x78] sm:$0xff] %v702
    %735 = vst [vmem:[#allocation3 + $0x80] sm:$0xf] %v703
    %736 = vst [vmem:[#allocation3 + $0x88] sm:$0xf] %v704
    %737 = vst [vmem:[#allocation3 + $0x90] sm:$0xf] %v705
    %738 = vst [vmem:[#allocation3 + $0x98] sm:$0xf] %v706
    %739 = vst [vmem:[#allocation3 + $0xa0] sm:$0xf] %v707
    %740 = vst [vmem:[#allocation3 + $0xa8] sm:$0xf] %v708
    %741 = vst [vmem:[#allocation3 + $0xb0] sm:$0xf] %v709
    %742 = vst [vmem:[#allocation3 + $0xb8] sm:$0xf] %v710
    %743 = vst [vmem:[#allocation3 + $0xc0] sm:$0xf] %v711
    %744 = vst [vmem:[#allocation3 + $0xc8] sm:$0xf] %v712
    %745 = vst [vmem:[#allocation3 + $0xd0] sm:$0xf] %v713
    %746 = vst [vmem:[#allocation3 + $0xd8] sm:$0xf] %v714
    %747 = vst [vmem:[#allocation3 + $0xe0] sm:$0xf] %v715
    %748 = vst [vmem:[#allocation3 + $0xe8] sm:$0xf] %v716
    %749 = vst [vmem:[#allocation3 + $0xf0] sm:$0xf] %v717
    %750 = vst [vmem:[#allocation3 + $0xf8] sm:$0xf] %v718
    %v751 = vmax.f32 %v90, 0.0
    %v752 = vmax.f32 %v91, 0.0
    %v753 = vmax.f32 %v92, 0.0
    %v754 = vmax.f32 %v93, 0.0
    %v755 = vmax.f32 %v94, 0.0
    %v756 = vmax.f32 %v95, 0.0
    %v757 = vmax.f32 %v96, 0.0
    %v758 = vmax.f32 %v97, 0.0
    %v759 = vmax.f32 %v98, 0.0
    %v760 = vmax.f32 %v99, 0.0
    %v761 = vmax.f32 %v100, 0.0
    %v762 = vmax.f32 %v101, 0.0
    %v763 = vmax.f32 %v102, 0.0
    %v764 = vmax.f32 %v103, 0.0
    %v765 = vmax.f32 %v104, 0.0
    %v766 = vmax.f32 %v105, 0.0
    %v767 = vmul.f32 %v90, %v122
    %v768 = vmul.f32 %v91, %v123
    %v769 = vmul.f32 %v92, %v124
    %v770 = vmul.f32 %v93, %v125
    %v771 = vmul.f32 %v94, %v126
    %v772 = vmul.f32 %v95, %v127
    %v773 = vmul.f32 %v96, %v128
    %v774 = vmul.f32 %v97, %v129
    %v775 = vmul.f32 %v98, %v130
    %v776 = vmul.f32 %v99, %v131
    %v777 = vmul.f32 %v100, %v132
    %v778 = vmul.f32 %v101, %v133
    %v779 = vmul.f32 %v102, %v134
    %v780 = vmul.f32 %v103, %v135
    %v781 = vmul.f32 %v104, %v136
    %v782 = vmul.f32 %v105, %v137
    %v783 = vsub.f32 %v751, %v767
    %v784 = vsub.f32 %v752, %v768
    %v785 = vsub.f32 %v753, %v769
    %v786 = vsub.f32 %v754, %v770
    %v787 = vsub.f32 %v755, %v771
    %v788 = vsub.f32 %v756, %v772
    %v789 = vsub.f32 %v757, %v773
    %v790 = vsub.f32 %v758, %v774
    %v791 = vsub.f32 %v759, %v775
    %v792 = vsub.f32 %v760, %v776
    %v793 = vsub.f32 %v761, %v777
    %v794 = vsub.f32 %v762, %v778
    %v795 = vsub.f32 %v763, %v779
    %v796 = vsub.f32 %v764, %v780
    %v797 = vsub.f32 %v765, %v781
    %v798 = vsub.f32 %v766, %v782
    %v799 = vand.u32 2147483647, %v90
    %v800 = vand.u32 2147483647, %v91
    %v801 = vand.u32 2147483647, %v92
    %v802 = vand.u32 2147483647, %v93
    %v803 = vand.u32 2147483647, %v94
    %v804 = vand.u32 2147483647, %v95
    %v805 = vand.u32 2147483647, %v96
    %v806 = vand.u32 2147483647, %v97
    %v807 = vand.u32 2147483647, %v98
    %v808 = vand.u32 2147483647, %v99
    %v809 = vand.u32 2147483647, %v100
    %v810 = vand.u32 2147483647, %v101
    %v811 = vand.u32 2147483647, %v102
    %v812 = vand.u32 2147483647, %v103
    %v813 = vand.u32 2147483647, %v104
    %v814 = vand.u32 2147483647, %v105
    %v815 = vsub.f32 0.0, %v799
    %v816 = vsub.f32 0.0, %v800
    %v817 = vsub.f32 0.0, %v801
    %v818 = vsub.f32 0.0, %v802
    %v819 = vsub.f32 0.0, %v803
    %v820 = vsub.f32 0.0, %v804
    %v821 = vsub.f32 0.0, %v805
    %v822 = vsub.f32 0.0, %v806
    %v823 = vsub.f32 0.0, %v807
    %v824 = vsub.f32 0.0, %v808
    %v825 = vsub.f32 0.0, %v809
    %v826 = vsub.f32 0.0, %v810
    %v827 = vsub.f32 0.0, %v811
    %v828 = vsub.f32 0.0, %v812
    %v829 = vsub.f32 0.0, %v813
    %v830 = vsub.f32 0.0, %v814
    %v831 = vmul.f32 %v815, 1.442695
    %v832 = vpow.pop %v831
    %v833 = vmul.f32 %v816, 1.442695
    %v834 = vpow.pop %v833
    %v835 = vmul.f32 %v817, 1.442695
    %v836 = vpow.pop %v835
    %v837 = vmul.f32 %v818, 1.442695
    %v838 = vpow.pop %v837
    %v839 = vmul.f32 %v819, 1.442695
    %v840 = vpow.pop %v839
    %v841 = vmul.f32 %v820, 1.442695
    %v842 = vpow.pop %v841
    %v843 = vmul.f32 %v821, 1.442695
    %v844 = vpow.pop %v843
    %v845 = vmul.f32 %v822, 1.442695
    %v846 = vpow.pop %v845
    %v847 = vmul.f32 %v823, 1.442695
    %v848 = vpow.pop %v847
    %v849 = vmul.f32 %v824, 1.442695
    %v850 = vpow.pop %v849
    %v851 = vmul.f32 %v825, 1.442695
    %v852 = vpow.pop %v851
    %v853 = vmul.f32 %v826, 1.442695
    %v854 = vpow.pop %v853
    %v855 = vmul.f32 %v827, 1.442695
    %v856 = vpow.pop %v855
    %v857 = vmul.f32 %v828, 1.442695
    %v858 = vpow.pop %v857
    %v859 = vmul.f32 %v829, 1.442695
    %v860 = vpow.pop %v859
    %v861 = vmul.f32 %v830, 1.442695
    %v862 = vpow.pop %v861
    %v863 = vadd.f32 %v832, 1.0
    %v864 = vlog2.pop %v863
    %v865 = vmul.f32 %v864, 0.6931472
    %v866 = vmul.f32 -0.5, %v832
    %v867 = vadd.f32 %v866, 1.0
    %v868 = vmul.f32 %v867, %v832
    %v869 = vand.u32 2147483647, %v832
    %vm870 = vcmp.lt.f32.partialorder %v869, 0.0004427343
    %v871 = vsel %vm870, %v868, %v865
    %v872 = vadd.f32 %v834, 1.0
    %v873 = vlog2.pop %v872
    %v874 = vmul.f32 %v873, 0.6931472
    %v875 = vmul.f32 -0.5, %v834
    %v876 = vadd.f32 %v875, 1.0
    %v877 = vmul.f32 %v876, %v834
    %v878 = vand.u32 2147483647, %v834
    %vm879 = vcmp.lt.f32.partialorder %v878, 0.0004427343
    %v880 = vsel %vm879, %v877, %v874
    %v881 = vadd.f32 %v836, 1.0
    %v882 = vlog2.pop %v881
    %v883 = vmul.f32 %v882, 0.6931472
    %v884 = vmul.f32 -0.5, %v836
    %v885 = vadd.f32 %v884, 1.0
    %v886 = vmul.f32 %v885, %v836
    %v887 = vand.u32 2147483647, %v836
    %vm888 = vcmp.lt.f32.partialorder %v887, 0.0004427343
    %v889 = vsel %vm888, %v886, %v883
    %v890 = vadd.f32 %v838, 1.0
    %v891 = vlog2.pop %v890
    %v892 = vmul.f32 %v891, 0.6931472
    %v893 = vmul.f32 -0.5, %v838
    %v894 = vadd.f32 %v893, 1.0
    %v895 = vmul.f32 %v894, %v838
    %v896 = vand.u32 2147483647, %v838
    %vm897 = vcmp.lt.f32.partialorder %v896, 0.0004427343
    %v898 = vsel %vm897, %v895, %v892
    %v899 = vadd.f32 %v840, 1.0
    %v900 = vlog2.pop %v899
    %v901 = vmul.f32 %v900, 0.6931472
    %v902 = vmul.f32 -0.5, %v840
    %v903 = vadd.f32 %v902, 1.0
    %v904 = vmul.f32 %v903, %v840
    %v905 = vand.u32 2147483647, %v840
    %vm906 = vcmp.lt.f32.partialorder %v905, 0.0004427343
    %v907 = vsel %vm906, %v904, %v901
    %v908 = vadd.f32 %v842, 1.0
    %v909 = vlog2.pop %v908
    %v910 = vmul.f32 %v909, 0.6931472
    %v911 = vmul.f32 -0.5, %v842
    %v912 = vadd.f32 %v911, 1.0
    %v913 = vmul.f32 %v912, %v842
    %v914 = vand.u32 2147483647, %v842
    %vm915 = vcmp.lt.f32.partialorder %v914, 0.0004427343
    %v916 = vsel %vm915, %v913, %v910
    %v917 = vadd.f32 %v844, 1.0
    %v918 = vlog2.pop %v917
    %v919 = vmul.f32 %v918, 0.6931472
    %v920 = vmul.f32 -0.5, %v844
    %v921 = vadd.f32 %v920, 1.0
    %v922 = vmul.f32 %v921, %v844
    %v923 = vand.u32 2147483647, %v844
    %vm924 = vcmp.lt.f32.partialorder %v923, 0.0004427343
    %v925 = vsel %vm924, %v922, %v919
    %v926 = vadd.f32 %v846, 1.0
    %v927 = vlog2.pop %v926
    %v928 = vmul.f32 %v927, 0.6931472
    %v929 = vmul.f32 -0.5, %v846
    %v930 = vadd.f32 %v929, 1.0
    %v931 = vmul.f32 %v930, %v846
    %v932 = vand.u32 2147483647, %v846
    %vm933 = vcmp.lt.f32.partialorder %v932, 0.0004427343
    %v934 = vsel %vm933, %v931, %v928
    %v935 = vadd.f32 %v848, 1.0
    %v936 = vlog2.pop %v935
    %v937 = vmul.f32 %v936, 0.6931472
    %v938 = vmul.f32 -0.5, %v848
    %v939 = vadd.f32 %v938, 1.0
    %v940 = vmul.f32 %v939, %v848
    %v941 = vand.u32 2147483647, %v848
    %vm942 = vcmp.lt.f32.partialorder %v941, 0.0004427343
    %v943 = vsel %vm942, %v940, %v937
    %v944 = vadd.f32 %v850, 1.0
    %v945 = vlog2.pop %v944
    %v946 = vmul.f32 %v945, 0.6931472
    %v947 = vmul.f32 -0.5, %v850
    %v948 = vadd.f32 %v947, 1.0
    %v949 = vmul.f32 %v948, %v850
    %v950 = vand.u32 2147483647, %v850
    %vm951 = vcmp.lt.f32.partialorder %v950, 0.0004427343
    %v952 = vsel %vm951, %v949, %v946
    %v953 = vadd.f32 %v852, 1.0
    %v954 = vlog2.pop %v953
    %v955 = vmul.f32 %v954, 0.6931472
    %v956 = vmul.f32 -0.5, %v852
    %v957 = vadd.f32 %v956, 1.0
    %v958 = vmul.f32 %v957, %v852
    %v959 = vand.u32 2147483647, %v852
    %vm960 = vcmp.lt.f32.partialorder %v959, 0.0004427343
    %v961 = vsel %vm960, %v958, %v955
    %v962 = vadd.f32 %v854, 1.0
    %v963 = vlog2.pop %v962
    %v964 = vmul.f32 %v963, 0.6931472
    %v965 = vmul.f32 -0.5, %v854
    %v966 = vadd.f32 %v965, 1.0
    %v967 = vmul.f32 %v966, %v854
    %v968 = vand.u32 2147483647, %v854
    %vm969 = vcmp.lt.f32.partialorder %v968, 0.0004427343
    %v970 = vsel %vm969, %v967, %v964
    %v971 = vadd.f32 %v856, 1.0
    %v972 = vlog2.pop %v971
    %v973 = vmul.f32 %v972, 0.6931472
    %v974 = vmul.f32 -0.5, %v856
    %v975 = vadd.f32 %v974, 1.0
    %v976 = vmul.f32 %v975, %v856
    %v977 = vand.u32 2147483647, %v856
    %vm978 = vcmp.lt.f32.partialorder %v977, 0.0004427343
    %v979 = vsel %vm978, %v976, %v973
    %v980 = vadd.f32 %v858, 1.0
    %v981 = vlog2.pop %v980
    %v982 = vmul.f32 %v981, 0.6931472
    %v983 = vmul.f32 -0.5, %v858
    %v984 = vadd.f32 %v983, 1.0
    %v985 = vmul.f32 %v984, %v858
    %v986 = vand.u32 2147483647, %v858
    %vm987 = vcmp.lt.f32.partialorder %v986, 0.0004427343
    %v988 = vsel %vm987, %v985, %v982
    %v989 = vadd.f32 %v860, 1.0
    %v990 = vlog2.pop %v989
    %v991 = vmul.f32 %v990, 0.6931472
    %v992 = vmul.f32 -0.5, %v860
    %v993 = vadd.f32 %v992, 1.0
    %v994 = vmul.f32 %v993, %v860
    %v995 = vand.u32 2147483647, %v860
    %vm996 = vcmp.lt.f32.partialorder %v995, 0.0004427343
    %v997 = vsel %vm996, %v994, %v991
    %v998 = vadd.f32 %v862, 1.0
    %v999 = vlog2.pop %v998
    %v1000 = vmul.f32 %v999, 0.6931472
    %v1001 = vmul.f32 -0.5, %v862
    %v1002 = vadd.f32 %v1001, 1.0
    %v1003 = vmul.f32 %v1002, %v862
    %v1004 = vand.u32 2147483647, %v862
    %vm1005 = vcmp.lt.f32.partialorder %v1004, 0.0004427343
    %v1006 = vsel %vm1005, %v1003, %v1000
    %v1007 = vadd.f32 %v783, %v871
    %v1008 = vadd.f32 %v784, %v880
    %v1009 = vadd.f32 %v785, %v889
    %v1010 = vadd.f32 %v786, %v898
    %v1011 = vadd.f32 %v787, %v907
    %v1012 = vadd.f32 %v788, %v916
    %v1013 = vadd.f32 %v789, %v925
    %v1014 = vadd.f32 %v790, %v934
    %v1015 = vadd.f32 %v791, %v943
    %v1016 = vadd.f32 %v792, %v952
    %v1017 = vadd.f32 %v793, %v961
    %v1018 = vadd.f32 %v794, %v970
    %v1019 = vadd.f32 %v795, %v979
    %v1020 = vadd.f32 %v796, %v988
    %v1021 = vadd.f32 %v797, %v997
    %v1022 = vadd.f32 %v798, %v1006
    %v1039 = vrot.slane %v1007, 6
    %v1040 = vrot.slane %v1008, 6
    %v1041 = vrot.slane %v1009, 6
    %v1042 = vrot.slane %v1010, 6
    %v1043 = vrot.slane %v1011, 6
    %v1044 = vrot.slane %v1012, 6
    %v1045 = vrot.slane %v1013, 6
    %v1046 = vrot.slane %v1014, 6
    %v1047 = vrot.slane %v1015, 6
    %v1048 = vrot.slane %v1016, 6
    %v1049 = vrot.slane %v1017, 6
    %v1050 = vrot.slane %v1018, 6
    %v1051 = vrot.slane %v1019, 6
    %v1052 = vrot.slane %v1020, 6
    %v1053 = vrot.slane %v1021, 6
    %v1054 = vrot.slane %v1022, 6
    %v1071 = vadd.f32 %v1007, %v1039
    %v1072 = vadd.f32 %v1008, %v1040
    %v1073 = vadd.f32 %v1009, %v1041
    %v1074 = vadd.f32 %v1010, %v1042
    %v1075 = vadd.f32 %v1011, %v1043
    %v1076 = vadd.f32 %v1012, %v1044
    %v1077 = vadd.f32 %v1013, %v1045
    %v1078 = vadd.f32 %v1014, %v1046
    %v1079 = vadd.f32 %v1015, %v1047
    %v1080 = vadd.f32 %v1016, %v1048
    %v1081 = vadd.f32 %v1017, %v1049
    %v1082 = vadd.f32 %v1018, %v1050
    %v1083 = vadd.f32 %v1019, %v1051
    %v1084 = vadd.f32 %v1020, %v1052
    %v1085 = vadd.f32 %v1021, %v1053
    %v1086 = vadd.f32 %v1022, %v1054
    %v1087 = vld [vmem:[#allocation4] sm:$0xff]
    %v1088 = vld [vmem:[#allocation4 + $0x8] sm:$0xff]
    %v1105 = vrot.slane %v239, 6
    %v1106 = vrot.slane %v240, 6
    %v1107 = vrot.slane %v241, 6
    %v1108 = vrot.slane %v242, 6
    %v1109 = vrot.slane %v243, 6
    %v1110 = vrot.slane %v244, 6
    %v1111 = vrot.slane %v245, 6
    %v1112 = vrot.slane %v246, 6
    %v1113 = vrot.slane %v247, 6
    %v1114 = vrot.slane %v248, 6
    %v1115 = vrot.slane %v249, 6
    %v1116 = vrot.slane %v250, 6
    %v1117 = vrot.slane %v251, 6
    %v1118 = vrot.slane %v252, 6
    %v1119 = vrot.slane %v253, 6
    %v1120 = vrot.slane %v254, 6
    %v1137 = vmul.f32 %v1071, %v1105
    %v1138 = vmul.f32 %v1072, %v1106
    %v1139 = vmul.f32 %v1073, %v1107
    %v1140 = vmul.f32 %v1074, %v1108
    %v1141 = vmul.f32 %v1075, %v1109
    %v1142 = vmul.f32 %v1076, %v1110
    %v1143 = vmul.f32 %v1077, %v1111
    %v1144 = vmul.f32 %v1078, %v1112
    %v1145 = vmul.f32 %v1079, %v1113
    %v1146 = vmul.f32 %v1080, %v1114
    %v1147 = vmul.f32 %v1081, %v1115
    %v1148 = vmul.f32 %v1082, %v1116
    %v1149 = vmul.f32 %v1083, %v1117
    %v1150 = vmul.f32 %v1084, %v1118
    %v1151 = vmul.f32 %v1085, %v1119
    %v1152 = vmul.f32 %v1086, %v1120
    %v1169 = vcombine.low %v1137, %v1138
    %v1170 = vcombine.low %v1139, %v1140
    %v1171 = vcombine.low %v1141, %v1142
    %v1172 = vcombine.low %v1143, %v1144
    %v1174 = vunpack.c.l.s4 1966171168
    %v1175 = vunpack.c.0.s8 %v1174
    %v1176 = vlaneseq
    %v1177 = vshrl.u32 %v1176, 7
    %v1178 = vsub.s32 %v1175, %v1177
    %v1179 = vrot.slane %v1169, %v1178
    %v1181 = vunpack.c.l.s4 1966171168
    %v1182 = vunpack.c.0.s8 %v1181
    %v1183 = vlaneseq
    %v1184 = vshrl.u32 %v1183, 7
    %v1185 = vsub.s32 %v1182, %v1184
    %v1186 = vrot.slane %v1170, %v1185
    %v1188 = vunpack.c.l.s4 1966171168
    %v1189 = vunpack.c.0.s8 %v1188
    %v1190 = vlaneseq
    %v1191 = vshrl.u32 %v1190, 7
    %v1192 = vsub.s32 %v1189, %v1191
    %v1193 = vrot.slane %v1171, %v1192
    %v1195 = vunpack.c.l.s4 1966171168
    %v1196 = vunpack.c.0.s8 %v1195
    %v1197 = vlaneseq
    %v1198 = vshrl.u32 %v1197, 7
    %v1199 = vsub.s32 %v1196, %v1198
    %v1200 = vrot.slane %v1172, %v1199
    %v1201 = vcombine.low %v1179, %v1186
    %v1202 = vcombine.low %v1193, %v1200
    %v1204 = vunpack.c.l.s4 1966171168
    %v1205 = vunpack.c.0.s8 %v1204
    %v1206 = vlaneseq
    %v1207 = vshrl.u32 %v1206, 7
    %v1208 = vsub.s32 %v1205, %v1207
    %v1209 = vrot.slane %v1201, %v1208
    %v1211 = vunpack.c.l.s4 1966171168
    %v1212 = vunpack.c.0.s8 %v1211
    %v1213 = vlaneseq
    %v1214 = vshrl.u32 %v1213, 7
    %v1215 = vsub.s32 %v1212, %v1214
    %v1216 = vrot.slane %v1202, %v1215
    %v1217 = vcombine.low %v1209, %v1216
    %v1218 = vcombine.low %v1145, %v1146
    %v1219 = vcombine.low %v1147, %v1148
    %v1220 = vcombine.low %v1149, %v1150
    %v1221 = vcombine.low %v1151, %v1152
    %v1223 = vunpack.c.l.s4 1966171168
    %v1224 = vunpack.c.0.s8 %v1223
    %v1225 = vlaneseq
    %v1226 = vshrl.u32 %v1225, 7
    %v1227 = vsub.s32 %v1224, %v1226
    %v1228 = vrot.slane %v1218, %v1227
    %v1230 = vunpack.c.l.s4 1966171168
    %v1231 = vunpack.c.0.s8 %v1230
    %v1232 = vlaneseq
    %v1233 = vshrl.u32 %v1232, 7
    %v1234 = vsub.s32 %v1231, %v1233
    %v1235 = vrot.slane %v1219, %v1234
    %v1237 = vunpack.c.l.s4 1966171168
    %v1238 = vunpack.c.0.s8 %v1237
    %v1239 = vlaneseq
    %v1240 = vshrl.u32 %v1239, 7
    %v1241 = vsub.s32 %v1238, %v1240
    %v1242 = vrot.slane %v1220, %v1241
    %v1244 = vunpack.c.l.s4 1966171168
    %v1245 = vunpack.c.0.s8 %v1244
    %v1246 = vlaneseq
    %v1247 = vshrl.u32 %v1246, 7
    %v1248 = vsub.s32 %v1245, %v1247
    %v1249 = vrot.slane %v1221, %v1248
    %v1250 = vcombine.low %v1228, %v1235
    %v1251 = vcombine.low %v1242, %v1249
    %v1253 = vunpack.c.l.s4 1966171168
    %v1254 = vunpack.c.0.s8 %v1253
    %v1255 = vlaneseq
    %v1256 = vshrl.u32 %v1255, 7
    %v1257 = vsub.s32 %v1254, %v1256
    %v1258 = vrot.slane %v1250, %v1257
    %v1260 = vunpack.c.l.s4 1966171168
    %v1261 = vunpack.c.0.s8 %v1260
    %v1262 = vlaneseq
    %v1263 = vshrl.u32 %v1262, 7
    %v1264 = vsub.s32 %v1261, %v1263
    %v1265 = vrot.slane %v1251, %v1264
    %v1266 = vcombine.low %v1258, %v1265
    %v1269 = vadd.f32 %v1087, %v1217
    %v1270 = vadd.f32 %v1088, %v1266
    %1271 = vst [vmem:[#allocation4] sm:$0xff] %v1269
    %1272 = vst [vmem:[#allocation4 + $0x8] sm:$0xff] %v1270
    %v1273 = vld [vmem:[#allocation5] sm:$0xff]
    %v1274 = vld [vmem:[#allocation5 + $0x8] sm:$0xff]
    %v1291 = vrot.slane %v287, 6
    %v1292 = vrot.slane %v288, 6
    %v1293 = vrot.slane %v289, 6
    %v1294 = vrot.slane %v290, 6
    %v1295 = vrot.slane %v291, 6
    %v1296 = vrot.slane %v292, 6
    %v1297 = vrot.slane %v293, 6
    %v1298 = vrot.slane %v294, 6
    %v1299 = vrot.slane %v295, 6
    %v1300 = vrot.slane %v296, 6
    %v1301 = vrot.slane %v297, 6
    %v1302 = vrot.slane %v298, 6
    %v1303 = vrot.slane %v299, 6
    %v1304 = vrot.slane %v300, 6
    %v1305 = vrot.slane %v301, 6
    %v1306 = vrot.slane %v302, 6
    %v1323 = vmul.f32 %v1071, %v1291
    %v1324 = vmul.f32 %v1072, %v1292
    %v1325 = vmul.f32 %v1073, %v1293
    %v1326 = vmul.f32 %v1074, %v1294
    %v1327 = vmul.f32 %v1075, %v1295
    %v1328 = vmul.f32 %v1076, %v1296
    %v1329 = vmul.f32 %v1077, %v1297
    %v1330 = vmul.f32 %v1078, %v1298
    %v1331 = vmul.f32 %v1079, %v1299
    %v1332 = vmul.f32 %v1080, %v1300
    %v1333 = vmul.f32 %v1081, %v1301
    %v1334 = vmul.f32 %v1082, %v1302
    %v1335 = vmul.f32 %v1083, %v1303
    %v1336 = vmul.f32 %v1084, %v1304
    %v1337 = vmul.f32 %v1085, %v1305
    %v1338 = vmul.f32 %v1086, %v1306
    %v1355 = vcombine.low %v1323, %v1324
    %v1356 = vcombine.low %v1325, %v1326
    %v1357 = vcombine.low %v1327, %v1328
    %v1358 = vcombine.low %v1329, %v1330
    %v1360 = vunpack.c.l.s4 1966171168
    %v1361 = vunpack.c.0.s8 %v1360
    %v1362 = vlaneseq
    %v1363 = vshrl.u32 %v1362, 7
    %v1364 = vsub.s32 %v1361, %v1363
    %v1365 = vrot.slane %v1355, %v1364
    %v1367 = vunpack.c.l.s4 1966171168
    %v1368 = vunpack.c.0.s8 %v1367
    %v1369 = vlaneseq
    %v1370 = vshrl.u32 %v1369, 7
    %v1371 = vsub.s32 %v1368, %v1370
    %v1372 = vrot.slane %v1356, %v1371
    %v1374 = vunpack.c.l.s4 1966171168
    %v1375 = vunpack.c.0.s8 %v1374
    %v1376 = vlaneseq
    %v1377 = vshrl.u32 %v1376, 7
    %v1378 = vsub.s32 %v1375, %v1377
    %v1379 = vrot.slane %v1357, %v1378
    %v1381 = vunpack.c.l.s4 1966171168
    %v1382 = vunpack.c.0.s8 %v1381
    %v1383 = vlaneseq
    %v1384 = vshrl.u32 %v1383, 7
    %v1385 = vsub.s32 %v1382, %v1384
    %v1386 = vrot.slane %v1358, %v1385
    %v1387 = vcombine.low %v1365, %v1372
    %v1388 = vcombine.low %v1379, %v1386
    %v1390 = vunpack.c.l.s4 1966171168
    %v1391 = vunpack.c.0.s8 %v1390
    %v1392 = vlaneseq
    %v1393 = vshrl.u32 %v1392, 7
    %v1394 = vsub.s32 %v1391, %v1393
    %v1395 = vrot.slane %v1387, %v1394
    %v1397 = vunpack.c.l.s4 1966171168
    %v1398 = vunpack.c.0.s8 %v1397
    %v1399 = vlaneseq
    %v1400 = vshrl.u32 %v1399, 7
    %v1401 = vsub.s32 %v1398, %v1400
    %v1402 = vrot.slane %v1388, %v1401
    %v1403 = vcombine.low %v1395, %v1402
    %v1404 = vcombine.low %v1331, %v1332
    %v1405 = vcombine.low %v1333, %v1334
    %v1406 = vcombine.low %v1335, %v1336
    %v1407 = vcombine.low %v1337, %v1338
    %v1409 = vunpack.c.l.s4 1966171168
    %v1410 = vunpack.c.0.s8 %v1409
    %v1411 = vlaneseq
    %v1412 = vshrl.u32 %v1411, 7
    %v1413 = vsub.s32 %v1410, %v1412
    %v1414 = vrot.slane %v1404, %v1413
    %v1416 = vunpack.c.l.s4 1966171168
    %v1417 = vunpack.c.0.s8 %v1416
    %v1418 = vlaneseq
    %v1419 = vshrl.u32 %v1418, 7
    %v1420 = vsub.s32 %v1417, %v1419
    %v1421 = vrot.slane %v1405, %v1420
    %v1423 = vunpack.c.l.s4 1966171168
    %v1424 = vunpack.c.0.s8 %v1423
    %v1425 = vlaneseq
    %v1426 = vshrl.u32 %v1425, 7
    %v1427 = vsub.s32 %v1424, %v1426
    %v1428 = vrot.slane %v1406, %v1427
    %v1430 = vunpack.c.l.s4 1966171168
    %v1431 = vunpack.c.0.s8 %v1430
    %v1432 = vlaneseq
    %v1433 = vshrl.u32 %v1432, 7
    %v1434 = vsub.s32 %v1431, %v1433
    %v1435 = vrot.slane %v1407, %v1434
    %v1436 = vcombine.low %v1414, %v1421
    %v1437 = vcombine.low %v1428, %v1435
    %v1439 = vunpack.c.l.s4 1966171168
    %v1440 = vunpack.c.0.s8 %v1439
    %v1441 = vlaneseq
    %v1442 = vshrl.u32 %v1441, 7
    %v1443 = vsub.s32 %v1440, %v1442
    %v1444 = vrot.slane %v1436, %v1443
    %v1446 = vunpack.c.l.s4 1966171168
    %v1447 = vunpack.c.0.s8 %v1446
    %v1448 = vlaneseq
    %v1449 = vshrl.u32 %v1448, 7
    %v1450 = vsub.s32 %v1447, %v1449
    %v1451 = vrot.slane %v1437, %v1450
    %v1452 = vcombine.low %v1444, %v1451
    %v1455 = vadd.f32 %v1273, %v1403
    %v1456 = vadd.f32 %v1274, %v1452
    %1457 = vst [vmem:[#allocation5] sm:$0xff] %v1455
    %1458 = vst [vmem:[#allocation5 + $0x8] sm:$0xff] %v1456
    %v1459 = vld [vmem:[#allocation6] sm:$0xff]
    %v1460 = vld [vmem:[#allocation6 + $0x8] sm:$0xff]
    %v1461 = vcombine.high %v239, %v240
    %v1462 = vcombine.high %v241, %v242
    %v1463 = vcombine.high %v243, %v244
    %v1464 = vcombine.high %v245, %v246
    %v1466 = vunpack.c.l.s4 1966171168
    %v1467 = vunpack.c.0.s8 %v1466
    %v1468 = vlaneseq
    %v1469 = vshrl.u32 %v1468, 7
    %v1470 = vsub.s32 %v1467, %v1469
    %v1471 = vrot.slane %v1461, %v1470
    %v1473 = vunpack.c.l.s4 1966171168
    %v1474 = vunpack.c.0.s8 %v1473
    %v1475 = vlaneseq
    %v1476 = vshrl.u32 %v1475, 7
    %v1477 = vsub.s32 %v1474, %v1476
    %v1478 = vrot.slane %v1462, %v1477
    %v1480 = vunpack.c.l.s4 1966171168
    %v1481 = vunpack.c.0.s8 %v1480
    %v1482 = vlaneseq
    %v1483 = vshrl.u32 %v1482, 7
    %v1484 = vsub.s32 %v1481, %v1483
    %v1485 = vrot.slane %v1463, %v1484
    %v1487 = vunpack.c.l.s4 1966171168
    %v1488 = vunpack.c.0.s8 %v1487
    %v1489 = vlaneseq
    %v1490 = vshrl.u32 %v1489, 7
    %v1491 = vsub.s32 %v1488, %v1490
    %v1492 = vrot.slane %v1464, %v1491
    %v1493 = vcombine.low %v1471, %v1478
    %v1494 = vcombine.low %v1485, %v1492
    %v1496 = vunpack.c.l.s4 1966171168
    %v1497 = vunpack.c.0.s8 %v1496
    %v1498 = vlaneseq
    %v1499 = vshrl.u32 %v1498, 7
    %v1500 = vsub.s32 %v1497, %v1499
    %v1501 = vrot.slane %v1493, %v1500
    %v1503 = vunpack.c.l.s4 1966171168
    %v1504 = vunpack.c.0.s8 %v1503
    %v1505 = vlaneseq
    %v1506 = vshrl.u32 %v1505, 7
    %v1507 = vsub.s32 %v1504, %v1506
    %v1508 = vrot.slane %v1494, %v1507
    %v1509 = vcombine.high %v1501, %v1508
    %v1510 = vcombine.high %v247, %v248
    %v1511 = vcombine.high %v249, %v250
    %v1512 = vcombine.high %v251, %v252
    %v1513 = vcombine.high %v253, %v254
    %v1515 = vunpack.c.l.s4 1966171168
    %v1516 = vunpack.c.0.s8 %v1515
    %v1517 = vlaneseq
    %v1518 = vshrl.u32 %v1517, 7
    %v1519 = vsub.s32 %v1516, %v1518
    %v1520 = vrot.slane %v1510, %v1519
    %v1522 = vunpack.c.l.s4 1966171168
    %v1523 = vunpack.c.0.s8 %v1522
    %v1524 = vlaneseq
    %v1525 = vshrl.u32 %v1524, 7
    %v1526 = vsub.s32 %v1523, %v1525
    %v1527 = vrot.slane %v1511, %v1526
    %v1529 = vunpack.c.l.s4 1966171168
    %v1530 = vunpack.c.0.s8 %v1529
    %v1531 = vlaneseq
    %v1532 = vshrl.u32 %v1531, 7
    %v1533 = vsub.s32 %v1530, %v1532
    %v1534 = vrot.slane %v1512, %v1533
    %v1536 = vunpack.c.l.s4 1966171168
    %v1537 = vunpack.c.0.s8 %v1536
    %v1538 = vlaneseq
    %v1539 = vshrl.u32 %v1538, 7
    %v1540 = vsub.s32 %v1537, %v1539
    %v1541 = vrot.slane %v1513, %v1540
    %v1542 = vcombine.low %v1520, %v1527
    %v1543 = vcombine.low %v1534, %v1541
    %v1545 = vunpack.c.l.s4 1966171168
    %v1546 = vunpack.c.0.s8 %v1545
    %v1547 = vlaneseq
    %v1548 = vshrl.u32 %v1547, 7
    %v1549 = vsub.s32 %v1546, %v1548
    %v1550 = vrot.slane %v1542, %v1549
    %v1552 = vunpack.c.l.s4 1966171168
    %v1553 = vunpack.c.0.s8 %v1552
    %v1554 = vlaneseq
    %v1555 = vshrl.u32 %v1554, 7
    %v1556 = vsub.s32 %v1553, %v1555
    %v1557 = vrot.slane %v1543, %v1556
    %v1558 = vcombine.high %v1550, %v1557
    %v1561 = vadd.f32 %v1459, %v1509
    %v1562 = vadd.f32 %v1460, %v1558
    %1563 = vst [vmem:[#allocation6] sm:$0xff] %v1561
    %1564 = vst [vmem:[#allocation6 + $0x8] sm:$0xff] %v1562
    %v1565 = vld [vmem:[#allocation7] sm:$0xff]
    %v1566 = vld [vmem:[#allocation7 + $0x8] sm:$0xff]
    %v1567 = vcombine.high %v287, %v288
    %v1568 = vcombine.high %v289, %v290
    %v1569 = vcombine.high %v291, %v292
    %v1570 = vcombine.high %v293, %v294
    %v1572 = vunpack.c.l.s4 1966171168
    %v1573 = vunpack.c.0.s8 %v1572
    %v1574 = vlaneseq
    %v1575 = vshrl.u32 %v1574, 7
    %v1576 = vsub.s32 %v1573, %v1575
    %v1577 = vrot.slane %v1567, %v1576
    %v1579 = vunpack.c.l.s4 1966171168
    %v1580 = vunpack.c.0.s8 %v1579
    %v1581 = vlaneseq
    %v1582 = vshrl.u32 %v1581, 7
    %v1583 = vsub.s32 %v1580, %v1582
    %v1584 = vrot.slane %v1568, %v1583
    %v1586 = vunpack.c.l.s4 1966171168
    %v1587 = vunpack.c.0.s8 %v1586
    %v1588 = vlaneseq
    %v1589 = vshrl.u32 %v1588, 7
    %v1590 = vsub.s32 %v1587, %v1589
    %v1591 = vrot.slane %v1569, %v1590
    %v1593 = vunpack.c.l.s4 1966171168
    %v1594 = vunpack.c.0.s8 %v1593
    %v1595 = vlaneseq
    %v1596 = vshrl.u32 %v1595, 7
    %v1597 = vsub.s32 %v1594, %v1596
    %v1598 = vrot.slane %v1570, %v1597
    %v1599 = vcombine.low %v1577, %v1584
    %v1600 = vcombine.low %v1591, %v1598
    %v1602 = vunpack.c.l.s4 1966171168
    %v1603 = vunpack.c.0.s8 %v1602
    %v1604 = vlaneseq
    %v1605 = vshrl.u32 %v1604, 7
    %v1606 = vsub.s32 %v1603, %v1605
    %v1607 = vrot.slane %v1599, %v1606
    %v1609 = vunpack.c.l.s4 1966171168
    %v1610 = vunpack.c.0.s8 %v1609
    %v1611 = vlaneseq
    %v1612 = vshrl.u32 %v1611, 7
    %v1613 = vsub.s32 %v1610, %v1612
    %v1614 = vrot.slane %v1600, %v1613
    %v1615 = vcombine.high %v1607, %v1614
    %v1616 = vcombine.high %v295, %v296
    %v1617 = vcombine.high %v297, %v298
    %v1618 = vcombine.high %v299, %v300
    %v1619 = vcombine.high %v301, %v302
    %v1621 = vunpack.c.l.s4 1966171168
    %v1622 = vunpack.c.0.s8 %v1621
    %v1623 = vlaneseq
    %v1624 = vshrl.u32 %v1623, 7
    %v1625 = vsub.s32 %v1622, %v1624
    %v1626 = vrot.slane %v1616, %v1625
    %v1628 = vunpack.c.l.s4 1966171168
    %v1629 = vunpack.c.0.s8 %v1628
    %v1630 = vlaneseq
    %v1631 = vshrl.u32 %v1630, 7
    %v1632 = vsub.s32 %v1629, %v1631
    %v1633 = vrot.slane %v1617, %v1632
    %v1635 = vunpack.c.l.s4 1966171168
    %v1636 = vunpack.c.0.s8 %v1635
    %v1637 = vlaneseq
    %v1638 = vshrl.u32 %v1637, 7
    %v1639 = vsub.s32 %v1636, %v1638
    %v1640 = vrot.slane %v1618, %v1639
    %v1642 = vunpack.c.l.s4 1966171168
    %v1643 = vunpack.c.0.s8 %v1642
    %v1644 = vlaneseq
    %v1645 = vshrl.u32 %v1644, 7
    %v1646 = vsub.s32 %v1643, %v1645
    %v1647 = vrot.slane %v1619, %v1646
    %v1648 = vcombine.low %v1626, %v1633
    %v1649 = vcombine.low %v1640, %v1647
    %v1651 = vunpack.c.l.s4 1966171168
    %v1652 = vunpack.c.0.s8 %v1651
    %v1653 = vlaneseq
    %v1654 = vshrl.u32 %v1653, 7
    %v1655 = vsub.s32 %v1652, %v1654
    %v1656 = vrot.slane %v1648, %v1655
    %v1658 = vunpack.c.l.s4 1966171168
    %v1659 = vunpack.c.0.s8 %v1658
    %v1660 = vlaneseq
    %v1661 = vshrl.u32 %v1660, 7
    %v1662 = vsub.s32 %v1659, %v1661
    %v1663 = vrot.slane %v1649, %v1662
    %v1664 = vcombine.high %v1656, %v1663
    %v1667 = vadd.f32 %v1565, %v1615
    %v1668 = vadd.f32 %v1566, %v1664
    %1669 = vst [vmem:[#allocation7] sm:$0xff] %v1667
    %1670 = vst [vmem:[#allocation7 + $0x8] sm:$0xff] %v1668
    // Predicated region
    $region14: #{loss_pallas.1} parent=1 // pred_check
      %p1671 = pneg %p14
    $region15: #{loss_pallas.1} parent=1 // pred_check_branch
      %1673 = sbr.rel (%p1671) target = $region17
    $region16: #{loss_pallas.1} parent=1 // pred_region
      %v1674 = vlaneseq
      %v1675 = vshrl.u32 %v1674, 7
      %v1676 = vadd.s32 %v1675, 8
      %vm1677 = vcmp.ne.s32.totalorder %v1675, 0
      %vm1678 = vcmp.ne.s32.totalorder %v1676, 0
      %vm1679 = vcmp.ne.s32.totalorder %v1675, 6
      %vm1680 = vcmp.ne.s32.totalorder %v1676, 6
      %vm1681 = vmand %vm1677, %vm1679
      %vm1682 = vmand %vm1678, %vm1680
      %v1683 = vsel %vm1681, 1, 0
      %v1684 = vsel %vm1682, 1, 0
      %v1685 = vcvt.s32.f32 %v1683
      %v1686 = vcvt.s32.f32 %v1684
      %vm1687 = vcmp.ge.s32.totalorder %v1675, 1
      %vm1688 = vcmp.ge.s32.totalorder %v1676, 1
      %vm1689 = vcmp.le.s32.totalorder %v1675, 5
      %vm1690 = vcmp.le.s32.totalorder %v1676, 5
      %vm1691 = vmand %vm1687, %vm1689
      %vm1692 = vmand %vm1688, %vm1690
      %v1693 = vsel %vm1691, 1, 0
      %v1694 = vsel %vm1692, 1, 0
      %v1695 = vcvt.s32.f32 %v1693
      %v1696 = vcvt.s32.f32 %v1694
      %v1697 = vld [vmem:[#allocation2] sm:$0xff]
      %v1698 = vld [vmem:[#allocation2 + $0x8] sm:$0xff]
      %v1699 = vld [vmem:[#allocation2 + $0x10] sm:$0xff]
      %v1700 = vld [vmem:[#allocation2 + $0x18] sm:$0xff]
      %v1701 = vld [vmem:[#allocation2 + $0x20] sm:$0xff]
      %v1702 = vld [vmem:[#allocation2 + $0x28] sm:$0xff]
      %v1703 = vld [vmem:[#allocation2 + $0x30] sm:$0xff]
      %v1704 = vld [vmem:[#allocation2 + $0x38] sm:$0xff]
      %v1705 = vld [vmem:[#allocation2 + $0x40] sm:$0xff]
      %v1706 = vld [vmem:[#allocation2 + $0x48] sm:$0xff]
      %v1707 = vld [vmem:[#allocation2 + $0x50] sm:$0xff]
      %v1708 = vld [vmem:[#allocation2 + $0x58] sm:$0xff]
      %v1709 = vld [vmem:[#allocation2 + $0x60] sm:$0xff]
      %v1710 = vld [vmem:[#allocation2 + $0x68] sm:$0xff]
      %v1711 = vld [vmem:[#allocation2 + $0x70] sm:$0xff]
      %v1712 = vld [vmem:[#allocation2 + $0x78] sm:$0xff]
      %v1713 = vld [vmem:[#allocation2 + $0x80] sm:$0xf]
      %v1714 = vld [vmem:[#allocation2 + $0x88] sm:$0xf]
      %v1715 = vld [vmem:[#allocation2 + $0x90] sm:$0xf]
      %v1716 = vld [vmem:[#allocation2 + $0x98] sm:$0xf]
      %v1717 = vld [vmem:[#allocation2 + $0xa0] sm:$0xf]
      %v1718 = vld [vmem:[#allocation2 + $0xa8] sm:$0xf]
      %v1719 = vld [vmem:[#allocation2 + $0xb0] sm:$0xf]
      %v1720 = vld [vmem:[#allocation2 + $0xb8] sm:$0xf]
      %v1721 = vld [vmem:[#allocation2 + $0xc0] sm:$0xf]
      %v1722 = vld [vmem:[#allocation2 + $0xc8] sm:$0xf]
      %v1723 = vld [vmem:[#allocation2 + $0xd0] sm:$0xf]
      %v1724 = vld [vmem:[#allocation2 + $0xd8] sm:$0xf]
      %v1725 = vld [vmem:[#allocation2 + $0xe0] sm:$0xf]
      %v1726 = vld [vmem:[#allocation2 + $0xe8] sm:$0xf]
      %v1727 = vld [vmem:[#allocation2 + $0xf0] sm:$0xf]
      %v1728 = vld [vmem:[#allocation2 + $0xf8] sm:$0xf]
      %v1729 = vmul.f32 %v1697, %v1685
      %v1730 = vmul.f32 %v1698, %v1685
      %v1731 = vmul.f32 %v1699, %v1685
      %v1732 = vmul.f32 %v1700, %v1685
      %v1733 = vmul.f32 %v1701, %v1685
      %v1734 = vmul.f32 %v1702, %v1685
      %v1735 = vmul.f32 %v1703, %v1685
      %v1736 = vmul.f32 %v1704, %v1685
      %v1737 = vmul.f32 %v1705, %v1685
      %v1738 = vmul.f32 %v1706, %v1685
      %v1739 = vmul.f32 %v1707, %v1685
      %v1740 = vmul.f32 %v1708, %v1685
      %v1741 = vmul.f32 %v1709, %v1685
      %v1742 = vmul.f32 %v1710, %v1685
      %v1743 = vmul.f32 %v1711, %v1685
      %v1744 = vmul.f32 %v1712, %v1685
      %v1745 = vmul.f32 %v1713, %v1686
      %v1746 = vmul.f32 %v1714, %v1686
      %v1747 = vmul.f32 %v1715, %v1686
      %v1748 = vmul.f32 %v1716, %v1686
      %v1749 = vmul.f32 %v1717, %v1686
      %v1750 = vmul.f32 %v1718, %v1686
      %v1751 = vmul.f32 %v1719, %v1686
      %v1752 = vmul.f32 %v1720, %v1686
      %v1753 = vmul.f32 %v1721, %v1686
      %v1754 = vmul.f32 %v1722, %v1686
      %v1755 = vmul.f32 %v1723, %v1686
      %v1756 = vmul.f32 %v1724, %v1686
      %v1757 = vmul.f32 %v1725, %v1686
      %v1758 = vmul.f32 %v1726, %v1686
      %v1759 = vmul.f32 %v1727, %v1686
      %v1760 = vmul.f32 %v1728, %v1686
      %v1761 = vadd.f32 %v1729, %v1730
      %v1762 = vadd.f32 %v1761, %v1731
      %v1763 = vadd.f32 %v1762, %v1732
      %v1764 = vadd.f32 %v1763, %v1733
      %v1765 = vadd.f32 %v1764, %v1734
      %v1766 = vadd.f32 %v1765, %v1735
      %v1767 = vadd.f32 %v1766, %v1736
      %v1768 = vadd.f32 %v1767, %v1737
      %v1769 = vadd.f32 %v1768, %v1738
      %v1770 = vadd.f32 %v1769, %v1739
      %v1771 = vadd.f32 %v1770, %v1740
      %v1772 = vadd.f32 %v1771, %v1741
      %v1773 = vadd.f32 %v1772, %v1742
      %v1774 = vadd.f32 %v1773, %v1743
      %v1775 = vadd.f32 %v1774, %v1744
      %1776 = vadd.xlane.f32.xlu0 %v1775
      %v1777 = vpop.xlane.xlu0 %1776
      %vm1778 = vcmask 1043456
      %v1779 = vsel %vm1778, %v1745, 0.0
      %v1780 = vsel %vm1778, %v1746, 0.0
      %v1781 = vadd.f32 %v1779, %v1780
      %v1782 = vsel %vm1778, %v1747, 0.0
      %v1783 = vadd.f32 %v1781, %v1782
      %v1784 = vsel %vm1778, %v1748, 0.0
      %v1785 = vadd.f32 %v1783, %v1784
      %v1786 = vsel %vm1778, %v1749, 0.0
      %v1787 = vadd.f32 %v1785, %v1786
      %v1788 = vsel %vm1778, %v1750, 0.0
      %v1789 = vadd.f32 %v1787, %v1788
      %v1790 = vsel %vm1778, %v1751, 0.0
      %v1791 = vadd.f32 %v1789, %v1790
      %v1792 = vsel %vm1778, %v1752, 0.0
      %v1793 = vadd.f32 %v1791, %v1792
      %v1794 = vsel %vm1778, %v1753, 0.0
      %v1795 = vadd.f32 %v1793, %v1794
      %v1796 = vsel %vm1778, %v1754, 0.0
      %v1797 = vadd.f32 %v1795, %v1796
      %v1798 = vsel %vm1778, %v1755, 0.0
      %v1799 = vadd.f32 %v1797, %v1798
      %v1800 = vsel %vm1778, %v1756, 0.0
      %v1801 = vadd.f32 %v1799, %v1800
      %v1802 = vsel %vm1778, %v1757, 0.0
      %v1803 = vadd.f32 %v1801, %v1802
      %v1804 = vsel %vm1778, %v1758, 0.0
      %v1805 = vadd.f32 %v1803, %v1804
      %v1806 = vsel %vm1778, %v1759, 0.0
      %v1807 = vadd.f32 %v1805, %v1806
      %v1808 = vsel %vm1778, %v1760, 0.0
      %v1809 = vadd.f32 %v1807, %v1808
      %1810 = vadd.xlane.f32.xlu0 %v1809
      %v1811 = vpop.xlane.xlu0 %1810
      %v1812 = vsel %vm1778, %v1811, 0.0
      %v1813 = vadd.f32 %v1777, %v1812
      %v1814 = vrot.slane %v1813, 4
      %v1815 = vadd.f32 %v1813, %v1814
      %v1816 = vrot.slane %v1815, 2
      %v1817 = vadd.f32 %v1815, %v1816
      %v1818 = vrot.slane %v1817, 1
      %v1819 = vadd.f32 %v1817, %v1818
      %v1820 = vld [vmem:[#allocation3] sm:$0xff]
      %v1821 = vld [vmem:[#allocation3 + $0x8] sm:$0xff]
      %v1822 = vld [vmem:[#allocation3 + $0x10] sm:$0xff]
      %v1823 = vld [vmem:[#allocation3 + $0x18] sm:$0xff]
      %v1824 = vld [vmem:[#allocation3 + $0x20] sm:$0xff]
      %v1825 = vld [vmem:[#allocation3 + $0x28] sm:$0xff]
      %v1826 = vld [vmem:[#allocation3 + $0x30] sm:$0xff]
      %v1827 = vld [vmem:[#allocation3 + $0x38] sm:$0xff]
      %v1828 = vld [vmem:[#allocation3 + $0x40] sm:$0xff]
      %v1829 = vld [vmem:[#allocation3 + $0x48] sm:$0xff]
      %v1830 = vld [vmem:[#allocation3 + $0x50] sm:$0xff]
      %v1831 = vld [vmem:[#allocation3 + $0x58] sm:$0xff]
      %v1832 = vld [vmem:[#allocation3 + $0x60] sm:$0xff]
      %v1833 = vld [vmem:[#allocation3 + $0x68] sm:$0xff]
      %v1834 = vld [vmem:[#allocation3 + $0x70] sm:$0xff]
      %v1835 = vld [vmem:[#allocation3 + $0x78] sm:$0xff]
      %v1836 = vld [vmem:[#allocation3 + $0x80] sm:$0xf]
      %v1837 = vld [vmem:[#allocation3 + $0x88] sm:$0xf]
      %v1838 = vld [vmem:[#allocation3 + $0x90] sm:$0xf]
      %v1839 = vld [vmem:[#allocation3 + $0x98] sm:$0xf]
      %v1840 = vld [vmem:[#allocation3 + $0xa0] sm:$0xf]
      %v1841 = vld [vmem:[#allocation3 + $0xa8] sm:$0xf]
      %v1842 = vld [vmem:[#allocation3 + $0xb0] sm:$0xf]
      %v1843 = vld [vmem:[#allocation3 + $0xb8] sm:$0xf]
      %v1844 = vld [vmem:[#allocation3 + $0xc0] sm:$0xf]
      %v1845 = vld [vmem:[#allocation3 + $0xc8] sm:$0xf]
      %v1846 = vld [vmem:[#allocation3 + $0xd0] sm:$0xf]
      %v1847 = vld [vmem:[#allocation3 + $0xd8] sm:$0xf]
      %v1848 = vld [vmem:[#allocation3 + $0xe0] sm:$0xf]
      %v1849 = vld [vmem:[#allocation3 + $0xe8] sm:$0xf]
      %v1850 = vld [vmem:[#allocation3 + $0xf0] sm:$0xf]
      %v1851 = vld [vmem:[#allocation3 + $0xf8] sm:$0xf]
      %v1852 = vmul.f32 %v1820, %v1695
      %v1853 = vmul.f32 %v1821, %v1695
      %v1854 = vmul.f32 %v1822, %v1695
      %v1855 = vmul.f32 %v1823, %v1695
      %v1856 = vmul.f32 %v1824, %v1695
      %v1857 = vmul.f32 %v1825, %v1695
      %v1858 = vmul.f32 %v1826, %v1695
      %v1859 = vmul.f32 %v1827, %v1695
      %v1860 = vmul.f32 %v1828, %v1695
      %v1861 = vmul.f32 %v1829, %v1695
      %v1862 = vmul.f32 %v1830, %v1695
      %v1863 = vmul.f32 %v1831, %v1695
      %v1864 = vmul.f32 %v1832, %v1695
      %v1865 = vmul.f32 %v1833, %v1695
      %v1866 = vmul.f32 %v1834, %v1695
      %v1867 = vmul.f32 %v1835, %v1695
      %v1868 = vmul.f32 %v1836, %v1696
      %v1869 = vmul.f32 %v1837, %v1696
      %v1870 = vmul.f32 %v1838, %v1696
      %v1871 = vmul.f32 %v1839, %v1696
      %v1872 = vmul.f32 %v1840, %v1696
      %v1873 = vmul.f32 %v1841, %v1696
      %v1874 = vmul.f32 %v1842, %v1696
      %v1875 = vmul.f32 %v1843, %v1696
      %v1876 = vmul.f32 %v1844, %v1696
      %v1877 = vmul.f32 %v1845, %v1696
      %v1878 = vmul.f32 %v1846, %v1696
      %v1879 = vmul.f32 %v1847, %v1696
      %v1880 = vmul.f32 %v1848, %v1696
      %v1881 = vmul.f32 %v1849, %v1696
      %v1882 = vmul.f32 %v1850, %v1696
      %v1883 = vmul.f32 %v1851, %v1696
      %v1884 = vadd.f32 %v1852, %v1853
      %v1885 = vadd.f32 %v1884, %v1854
      %v1886 = vadd.f32 %v1885, %v1855
      %v1887 = vadd.f32 %v1886, %v1856
      %v1888 = vadd.f32 %v1887, %v1857
      %v1889 = vadd.f32 %v1888, %v1858
      %v1890 = vadd.f32 %v1889, %v1859
      %v1891 = vadd.f32 %v1890, %v1860
      %v1892 = vadd.f32 %v1891, %v1861
      %v1893 = vadd.f32 %v1892, %v1862
      %v1894 = vadd.f32 %v1893, %v1863
      %v1895 = vadd.f32 %v1894, %v1864
      %v1896 = vadd.f32 %v1895, %v1865
      %v1897 = vadd.f32 %v1896, %v1866
      %v1898 = vadd.f32 %v1897, %v1867
      %1899 = vadd.xlane.f32.xlu0 %v1898
      %v1900 = vpop.xlane.xlu0 %1899
      %v1901 = vsel %vm1778, %v1868, 0.0
      %v1902 = vsel %vm1778, %v1869, 0.0
      %v1903 = vadd.f32 %v1901, %v1902
      %v1904 = vsel %vm1778, %v1870, 0.0
      %v1905 = vadd.f32 %v1903, %v1904
      %v1906 = vsel %vm1778, %v1871, 0.0
      %v1907 = vadd.f32 %v1905, %v1906
      %v1908 = vsel %vm1778, %v1872, 0.0
      %v1909 = vadd.f32 %v1907, %v1908
      %v1910 = vsel %vm1778, %v1873, 0.0
      %v1911 = vadd.f32 %v1909, %v1910
      %v1912 = vsel %vm1778, %v1874, 0.0
      %v1913 = vadd.f32 %v1911, %v1912
      %v1914 = vsel %vm1778, %v1875, 0.0
      %v1915 = vadd.f32 %v1913, %v1914
      %v1916 = vsel %vm1778, %v1876, 0.0
      %v1917 = vadd.f32 %v1915, %v1916
      %v1918 = vsel %vm1778, %v1877, 0.0
      %v1919 = vadd.f32 %v1917, %v1918
      %v1920 = vsel %vm1778, %v1878, 0.0
      %v1921 = vadd.f32 %v1919, %v1920
      %v1922 = vsel %vm1778, %v1879, 0.0
      %v1923 = vadd.f32 %v1921, %v1922
      %v1924 = vsel %vm1778, %v1880, 0.0
      %v1925 = vadd.f32 %v1923, %v1924
      %v1926 = vsel %vm1778, %v1881, 0.0
      %v1927 = vadd.f32 %v1925, %v1926
      %v1928 = vsel %vm1778, %v1882, 0.0
      %v1929 = vadd.f32 %v1927, %v1928
      %v1930 = vsel %vm1778, %v1883, 0.0
      %v1931 = vadd.f32 %v1929, %v1930
      %1932 = vadd.xlane.f32.xlu0 %v1931
      %v1933 = vpop.xlane.xlu0 %1932
      %v1934 = vsel %vm1778, %v1933, 0.0
      %v1935 = vadd.f32 %v1900, %v1934
      %v1936 = vrot.slane %v1935, 4
      %v1937 = vadd.f32 %v1935, %v1936
      %v1938 = vrot.slane %v1937, 2
      %v1939 = vadd.f32 %v1937, %v1938
      %v1940 = vrot.slane %v1939, 1
      %v1941 = vadd.f32 %v1939, %v1940
      %v1942 = vld [vmem:[#allocation4] sm:$0xff]
      %v1943 = vld [vmem:[#allocation4 + $0x8] sm:$0xff]
      %v1946 = vlaneseq
      %v1947 = vshrl.u32 %v1946, 7
      %v1948 = vsub.s32 0, %v1947
      %v1949 = vrot.slane %v1942, %v1948
      %v1950 = vlaneseq
      %v1951 = vshrl.u32 %v1950, 7
      %v1952 = vsub.s32 1, %v1951
      %v1953 = vrot.slane %v1942, %v1952
      %v1954 = vlaneseq
      %v1955 = vshrl.u32 %v1954, 7
      %v1956 = vsub.s32 2, %v1955
      %v1957 = vrot.slane %v1942, %v1956
      %v1958 = vlaneseq
      %v1959 = vshrl.u32 %v1958, 7
      %v1960 = vsub.s32 3, %v1959
      %v1961 = vrot.slane %v1942, %v1960
      %v1962 = vlaneseq
      %v1963 = vshrl.u32 %v1962, 7
      %v1964 = vsub.s32 4, %v1963
      %v1965 = vrot.slane %v1942, %v1964
      %v1966 = vlaneseq
      %v1967 = vshrl.u32 %v1966, 7
      %v1968 = vsub.s32 5, %v1967
      %v1969 = vrot.slane %v1942, %v1968
      %v1970 = vlaneseq
      %v1971 = vshrl.u32 %v1970, 7
      %v1972 = vsub.s32 6, %v1971
      %v1973 = vrot.slane %v1942, %v1972
      %v1974 = vlaneseq
      %v1975 = vshrl.u32 %v1974, 7
      %v1976 = vsub.s32 7, %v1975
      %v1977 = vrot.slane %v1942, %v1976
      %v1978 = vlaneseq
      %v1979 = vshrl.u32 %v1978, 7
      %v1980 = vsub.s32 0, %v1979
      %v1981 = vrot.slane %v1943, %v1980
      %v1982 = vlaneseq
      %v1983 = vshrl.u32 %v1982, 7
      %v1984 = vsub.s32 1, %v1983
      %v1985 = vrot.slane %v1943, %v1984
      %v1986 = vlaneseq
      %v1987 = vshrl.u32 %v1986, 7
      %v1988 = vsub.s32 2, %v1987
      %v1989 = vrot.slane %v1943, %v1988
      %v1990 = vlaneseq
      %v1991 = vshrl.u32 %v1990, 7
      %v1992 = vsub.s32 3, %v1991
      %v1993 = vrot.slane %v1943, %v1992
      %v1994 = vlaneseq
      %v1995 = vshrl.u32 %v1994, 7
      %v1996 = vsub.s32 4, %v1995
      %v1997 = vrot.slane %v1943, %v1996
      %v1998 = vlaneseq
      %v1999 = vshrl.u32 %v1998, 7
      %v2000 = vsub.s32 5, %v1999
      %v2001 = vrot.slane %v1943, %v2000
      %v2002 = vlaneseq
      %v2003 = vshrl.u32 %v2002, 7
      %v2004 = vsub.s32 6, %v2003
      %v2005 = vrot.slane %v1943, %v2004
      %v2006 = vlaneseq
      %v2007 = vshrl.u32 %v2006, 7
      %v2008 = vsub.s32 7, %v2007
      %v2009 = vrot.slane %v1943, %v2008
      %vm2026 = vcmask 1040384
      %v2027 = vsel %vm2026, %v1949, 0.0
      %v2028 = vsel %vm2026, %v1953, 0.0
      %v2029 = vadd.f32 %v2027, %v2028
      %v2030 = vsel %vm2026, %v1957, 0.0
      %v2031 = vadd.f32 %v2029, %v2030
      %v2032 = vsel %vm2026, %v1961, 0.0
      %v2033 = vadd.f32 %v2031, %v2032
      %v2034 = vsel %vm2026, %v1965, 0.0
      %v2035 = vadd.f32 %v2033, %v2034
      %v2036 = vsel %vm2026, %v1969, 0.0
      %v2037 = vadd.f32 %v2035, %v2036
      %v2038 = vsel %vm2026, %v1973, 0.0
      %v2039 = vadd.f32 %v2037, %v2038
      %v2040 = vsel %vm2026, %v1977, 0.0
      %v2041 = vadd.f32 %v2039, %v2040
      %v2042 = vsel %vm2026, %v1981, 0.0
      %v2043 = vadd.f32 %v2041, %v2042
      %v2044 = vsel %vm2026, %v1985, 0.0
      %v2045 = vadd.f32 %v2043, %v2044
      %v2046 = vsel %vm2026, %v1989, 0.0
      %v2047 = vadd.f32 %v2045, %v2046
      %v2048 = vsel %vm2026, %v1993, 0.0
      %v2049 = vadd.f32 %v2047, %v2048
      %v2050 = vsel %vm2026, %v1997, 0.0
      %v2051 = vadd.f32 %v2049, %v2050
      %v2052 = vsel %vm2026, %v2001, 0.0
      %v2053 = vadd.f32 %v2051, %v2052
      %v2054 = vsel %vm2026, %v2005, 0.0
      %v2055 = vadd.f32 %v2053, %v2054
      %v2056 = vsel %vm2026, %v2009, 0.0
      %v2057 = vadd.f32 %v2055, %v2056
      %2058 = vadd.xlane.f32.xlu0 %v2057
      %v2059 = vpop.xlane.xlu0 %2058
      %v2060 = vadd.f32 %v2059, 0.0
      %v2061 = vld [vmem:[#allocation5] sm:$0xff]
      %v2062 = vld [vmem:[#allocation5 + $0x8] sm:$0xff]
      %v2065 = vlaneseq
      %v2066 = vshrl.u32 %v2065, 7
      %v2067 = vsub.s32 0, %v2066
      %v2068 = vrot.slane %v2061, %v2067
      %v2069 = vlaneseq
      %v2070 = vshrl.u32 %v2069, 7
      %v2071 = vsub.s32 1, %v2070
      %v2072 = vrot.slane %v2061, %v2071
      %v2073 = vlaneseq
      %v2074 = vshrl.u32 %v2073, 7
      %v2075 = vsub.s32 2, %v2074
      %v2076 = vrot.slane %v2061, %v2075
      %v2077 = vlaneseq
      %v2078 = vshrl.u32 %v2077, 7
      %v2079 = vsub.s32 3, %v2078
      %v2080 = vrot.slane %v2061, %v2079
      %v2081 = vlaneseq
      %v2082 = vshrl.u32 %v2081, 7
      %v2083 = vsub.s32 4, %v2082
      %v2084 = vrot.slane %v2061, %v2083
      %v2085 = vlaneseq
      %v2086 = vshrl.u32 %v2085, 7
      %v2087 = vsub.s32 5, %v2086
      %v2088 = vrot.slane %v2061, %v2087
      %v2089 = vlaneseq
      %v2090 = vshrl.u32 %v2089, 7
      %v2091 = vsub.s32 6, %v2090
      %v2092 = vrot.slane %v2061, %v2091
      %v2093 = vlaneseq
      %v2094 = vshrl.u32 %v2093, 7
      %v2095 = vsub.s32 7, %v2094
      %v2096 = vrot.slane %v2061, %v2095
      %v2097 = vlaneseq
      %v2098 = vshrl.u32 %v2097, 7
      %v2099 = vsub.s32 0, %v2098
      %v2100 = vrot.slane %v2062, %v2099
      %v2101 = vlaneseq
      %v2102 = vshrl.u32 %v2101, 7
      %v2103 = vsub.s32 1, %v2102
      %v2104 = vrot.slane %v2062, %v2103
      %v2105 = vlaneseq
      %v2106 = vshrl.u32 %v2105, 7
      %v2107 = vsub.s32 2, %v2106
      %v2108 = vrot.slane %v2062, %v2107
      %v2109 = vlaneseq
      %v2110 = vshrl.u32 %v2109, 7
      %v2111 = vsub.s32 3, %v2110
      %v2112 = vrot.slane %v2062, %v2111
      %v2113 = vlaneseq
      %v2114 = vshrl.u32 %v2113, 7
      %v2115 = vsub.s32 4, %v2114
      %v2116 = vrot.slane %v2062, %v2115
      %v2117 = vlaneseq
      %v2118 = vshrl.u32 %v2117, 7
      %v2119 = vsub.s32 5, %v2118
      %v2120 = vrot.slane %v2062, %v2119
      %v2121 = vlaneseq
      %v2122 = vshrl.u32 %v2121, 7
      %v2123 = vsub.s32 6, %v2122
      %v2124 = vrot.slane %v2062, %v2123
      %v2125 = vlaneseq
      %v2126 = vshrl.u32 %v2125, 7
      %v2127 = vsub.s32 7, %v2126
      %v2128 = vrot.slane %v2062, %v2127
      %v2145 = vsel %vm2026, %v2068, 0.0
      %v2146 = vsel %vm2026, %v2072, 0.0
      %v2147 = vadd.f32 %v2145, %v2146
      %v2148 = vsel %vm2026, %v2076, 0.0
      %v2149 = vadd.f32 %v2147, %v2148
      %v2150 = vsel %vm2026, %v2080, 0.0
      %v2151 = vadd.f32 %v2149, %v2150
      %v2152 = vsel %vm2026, %v2084, 0.0
      %v2153 = vadd.f32 %v2151, %v2152
      %v2154 = vsel %vm2026, %v2088, 0.0
      %v2155 = vadd.f32 %v2153, %v2154
      %v2156 = vsel %vm2026, %v2092, 0.0
      %v2157 = vadd.f32 %v2155, %v2156
      %v2158 = vsel %vm2026, %v2096, 0.0
      %v2159 = vadd.f32 %v2157, %v2158
      %v2160 = vsel %vm2026, %v2100, 0.0
      %v2161 = vadd.f32 %v2159, %v2160
      %v2162 = vsel %vm2026, %v2104, 0.0
      %v2163 = vadd.f32 %v2161, %v2162
      %v2164 = vsel %vm2026, %v2108, 0.0
      %v2165 = vadd.f32 %v2163, %v2164
      %v2166 = vsel %vm2026, %v2112, 0.0
      %v2167 = vadd.f32 %v2165, %v2166
      %v2168 = vsel %vm2026, %v2116, 0.0
      %v2169 = vadd.f32 %v2167, %v2168
      %v2170 = vsel %vm2026, %v2120, 0.0
      %v2171 = vadd.f32 %v2169, %v2170
      %v2172 = vsel %vm2026, %v2124, 0.0
      %v2173 = vadd.f32 %v2171, %v2172
      %v2174 = vsel %vm2026, %v2128, 0.0
      %v2175 = vadd.f32 %v2173, %v2174
      %2176 = vadd.xlane.f32.xlu0 %v2175
      %v2177 = vpop.xlane.xlu0 %2176
      %v2178 = vadd.f32 %v2177, 0.0
      %v2179 = vld [vmem:[#allocation6] sm:$0xff]
      %v2180 = vld [vmem:[#allocation6 + $0x8] sm:$0xff]
      %v2183 = vlaneseq
      %v2184 = vshrl.u32 %v2183, 7
      %v2185 = vsub.s32 0, %v2184
      %v2186 = vrot.slane %v2179, %v2185
      %v2187 = vlaneseq
      %v2188 = vshrl.u32 %v2187, 7
      %v2189 = vsub.s32 1, %v2188
      %v2190 = vrot.slane %v2179, %v2189
      %v2191 = vlaneseq
      %v2192 = vshrl.u32 %v2191, 7
      %v2193 = vsub.s32 2, %v2192
      %v2194 = vrot.slane %v2179, %v2193
      %v2195 = vlaneseq
      %v2196 = vshrl.u32 %v2195, 7
      %v2197 = vsub.s32 3, %v2196
      %v2198 = vrot.slane %v2179, %v2197
      %v2199 = vlaneseq
      %v2200 = vshrl.u32 %v2199, 7
      %v2201 = vsub.s32 4, %v2200
      %v2202 = vrot.slane %v2179, %v2201
      %v2203 = vlaneseq
      %v2204 = vshrl.u32 %v2203, 7
      %v2205 = vsub.s32 5, %v2204
      %v2206 = vrot.slane %v2179, %v2205
      %v2207 = vlaneseq
      %v2208 = vshrl.u32 %v2207, 7
      %v2209 = vsub.s32 6, %v2208
      %v2210 = vrot.slane %v2179, %v2209
      %v2211 = vlaneseq
      %v2212 = vshrl.u32 %v2211, 7
      %v2213 = vsub.s32 7, %v2212
      %v2214 = vrot.slane %v2179, %v2213
      %v2215 = vlaneseq
      %v2216 = vshrl.u32 %v2215, 7
      %v2217 = vsub.s32 0, %v2216
      %v2218 = vrot.slane %v2180, %v2217
      %v2219 = vlaneseq
      %v2220 = vshrl.u32 %v2219, 7
      %v2221 = vsub.s32 1, %v2220
      %v2222 = vrot.slane %v2180, %v2221
      %v2223 = vlaneseq
      %v2224 = vshrl.u32 %v2223, 7
      %v2225 = vsub.s32 2, %v2224
      %v2226 = vrot.slane %v2180, %v2225
      %v2227 = vlaneseq
      %v2228 = vshrl.u32 %v2227, 7
      %v2229 = vsub.s32 3, %v2228
      %v2230 = vrot.slane %v2180, %v2229
      %v2231 = vlaneseq
      %v2232 = vshrl.u32 %v2231, 7
      %v2233 = vsub.s32 4, %v2232
      %v2234 = vrot.slane %v2180, %v2233
      %v2235 = vlaneseq
      %v2236 = vshrl.u32 %v2235, 7
      %v2237 = vsub.s32 5, %v2236
      %v2238 = vrot.slane %v2180, %v2237
      %v2239 = vlaneseq
      %v2240 = vshrl.u32 %v2239, 7
      %v2241 = vsub.s32 6, %v2240
      %v2242 = vrot.slane %v2180, %v2241
      %v2243 = vlaneseq
      %v2244 = vshrl.u32 %v2243, 7
      %v2245 = vsub.s32 7, %v2244
      %v2246 = vrot.slane %v2180, %v2245
      %v2263 = vsel %vm2026, %v2186, 0.0
      %v2264 = vsel %vm2026, %v2190, 0.0
      %v2265 = vadd.f32 %v2263, %v2264
      %v2266 = vsel %vm2026, %v2194, 0.0
      %v2267 = vadd.f32 %v2265, %v2266
      %v2268 = vsel %vm2026, %v2198, 0.0
      %v2269 = vadd.f32 %v2267, %v2268
      %v2270 = vsel %vm2026, %v2202, 0.0
      %v2271 = vadd.f32 %v2269, %v2270
      %v2272 = vsel %vm2026, %v2206, 0.0
      %v2273 = vadd.f32 %v2271, %v2272
      %v2274 = vsel %vm2026, %v2210, 0.0
      %v2275 = vadd.f32 %v2273, %v2274
      %v2276 = vsel %vm2026, %v2214, 0.0
      %v2277 = vadd.f32 %v2275, %v2276
      %v2278 = vsel %vm2026, %v2218, 0.0
      %v2279 = vadd.f32 %v2277, %v2278
      %v2280 = vsel %vm2026, %v2222, 0.0
      %v2281 = vadd.f32 %v2279, %v2280
      %v2282 = vsel %vm2026, %v2226, 0.0
      %v2283 = vadd.f32 %v2281, %v2282
      %v2284 = vsel %vm2026, %v2230, 0.0
      %v2285 = vadd.f32 %v2283, %v2284
      %v2286 = vsel %vm2026, %v2234, 0.0
      %v2287 = vadd.f32 %v2285, %v2286
      %v2288 = vsel %vm2026, %v2238, 0.0
      %v2289 = vadd.f32 %v2287, %v2288
      %v2290 = vsel %vm2026, %v2242, 0.0
      %v2291 = vadd.f32 %v2289, %v2290
      %v2292 = vsel %vm2026, %v2246, 0.0
      %v2293 = vadd.f32 %v2291, %v2292
      %2294 = vadd.xlane.f32.xlu0 %v2293
      %v2295 = vpop.xlane.xlu0 %2294
      %v2296 = vadd.f32 %v2295, 0.0
      %v2297 = vld [vmem:[#allocation7] sm:$0xff]
      %v2298 = vld [vmem:[#allocation7 + $0x8] sm:$0xff]
      %v2301 = vlaneseq
      %v2302 = vshrl.u32 %v2301, 7
      %v2303 = vsub.s32 0, %v2302
      %v2304 = vrot.slane %v2297, %v2303
      %v2305 = vlaneseq
      %v2306 = vshrl.u32 %v2305, 7
      %v2307 = vsub.s32 1, %v2306
      %v2308 = vrot.slane %v2297, %v2307
      %v2309 = vlaneseq
      %v2310 = vshrl.u32 %v2309, 7
      %v2311 = vsub.s32 2, %v2310
      %v2312 = vrot.slane %v2297, %v2311
      %v2313 = vlaneseq
      %v2314 = vshrl.u32 %v2313, 7
      %v2315 = vsub.s32 3, %v2314
      %v2316 = vrot.slane %v2297, %v2315
      %v2317 = vlaneseq
      %v2318 = vshrl.u32 %v2317, 7
      %v2319 = vsub.s32 4, %v2318
      %v2320 = vrot.slane %v2297, %v2319
      %v2321 = vlaneseq
      %v2322 = vshrl.u32 %v2321, 7
      %v2323 = vsub.s32 5, %v2322
      %v2324 = vrot.slane %v2297, %v2323
      %v2325 = vlaneseq
      %v2326 = vshrl.u32 %v2325, 7
      %v2327 = vsub.s32 6, %v2326
      %v2328 = vrot.slane %v2297, %v2327
      %v2329 = vlaneseq
      %v2330 = vshrl.u32 %v2329, 7
      %v2331 = vsub.s32 7, %v2330
      %v2332 = vrot.slane %v2297, %v2331
      %v2333 = vlaneseq
      %v2334 = vshrl.u32 %v2333, 7
      %v2335 = vsub.s32 0, %v2334
      %v2336 = vrot.slane %v2298, %v2335
      %v2337 = vlaneseq
      %v2338 = vshrl.u32 %v2337, 7
      %v2339 = vsub.s32 1, %v2338
      %v2340 = vrot.slane %v2298, %v2339
      %v2341 = vlaneseq
      %v2342 = vshrl.u32 %v2341, 7
      %v2343 = vsub.s32 2, %v2342
      %v2344 = vrot.slane %v2298, %v2343
      %v2345 = vlaneseq
      %v2346 = vshrl.u32 %v2345, 7
      %v2347 = vsub.s32 3, %v2346
      %v2348 = vrot.slane %v2298, %v2347
      %v2349 = vlaneseq
      %v2350 = vshrl.u32 %v2349, 7
      %v2351 = vsub.s32 4, %v2350
      %v2352 = vrot.slane %v2298, %v2351
      %v2353 = vlaneseq
      %v2354 = vshrl.u32 %v2353, 7
      %v2355 = vsub.s32 5, %v2354
      %v2356 = vrot.slane %v2298, %v2355
      %v2357 = vlaneseq
      %v2358 = vshrl.u32 %v2357, 7
      %v2359 = vsub.s32 6, %v2358
      %v2360 = vrot.slane %v2298, %v2359
      %v2361 = vlaneseq
      %v2362 = vshrl.u32 %v2361, 7
      %v2363 = vsub.s32 7, %v2362
      %v2364 = vrot.slane %v2298, %v2363
      %v2381 = vsel %vm2026, %v2304, 0.0
      %v2382 = vsel %vm2026, %v2308, 0.0
      %v2383 = vadd.f32 %v2381, %v2382
      %v2384 = vsel %vm2026, %v2312, 0.0
      %v2385 = vadd.f32 %v2383, %v2384
      %v2386 = vsel %vm2026, %v2316, 0.0
      %v2387 = vadd.f32 %v2385, %v2386
      %v2388 = vsel %vm2026, %v2320, 0.0
      %v2389 = vadd.f32 %v2387, %v2388
      %v2390 = vsel %vm2026, %v2324, 0.0
      %v2391 = vadd.f32 %v2389, %v2390
      %v2392 = vsel %vm2026, %v2328, 0.0
      %v2393 = vadd.f32 %v2391, %v2392
      %v2394 = vsel %vm2026, %v2332, 0.0
      %v2395 = vadd.f32 %v2393, %v2394
      %v2396 = vsel %vm2026, %v2336, 0.0
      %v2397 = vadd.f32 %v2395, %v2396
      %v2398 = vsel %vm2026, %v2340, 0.0
      %v2399 = vadd.f32 %v2397, %v2398
      %v2400 = vsel %vm2026, %v2344, 0.0
      %v2401 = vadd.f32 %v2399, %v2400
      %v2402 = vsel %vm2026, %v2348, 0.0
      %v2403 = vadd.f32 %v2401, %v2402
      %v2404 = vsel %vm2026, %v2352, 0.0
      %v2405 = vadd.f32 %v2403, %v2404
      %v2406 = vsel %vm2026, %v2356, 0.0
      %v2407 = vadd.f32 %v2405, %v2406
      %v2408 = vsel %vm2026, %v2360, 0.0
      %v2409 = vadd.f32 %v2407, %v2408
      %v2410 = vsel %vm2026, %v2364, 0.0
      %v2411 = vadd.f32 %v2409, %v2410
      %2412 = vadd.xlane.f32.xlu0 %v2411
      %v2413 = vpop.xlane.xlu0 %2412
      %v2414 = vadd.f32 %v2413, 0.0
      %vm2415 = vcmp.gt.f32.partialorder %v2296, 0.0
      %v2416 = vmul.f32 %v2296, 10.0
      %v2417 = vmax.f32 %v2416, 1.0
      %v2418 = vrcp.pop %v2417
      %v2419 = vmul.f32 %v1819, %v2418
      %v2420 = vsel %vm2415, %v2419, 0.0
      %v2421 = vmul.f32 %v2296, 2.0
      %v2422 = vmax.f32 %v2421, 1.0
      %v2423 = vrcp.pop %v2422
      %v2424 = vmul.f32 %v2060, %v2423
      %v2425 = vsel %vm2415, %v2424, 0.0
      %vm2426 = vcmp.gt.f32.partialorder %v2414, 0.0
      %v2427 = vmul.f32 %v2414, 5.0
      %v2428 = vmax.f32 %v2427, 1.0
      %v2429 = vrcp.pop %v2428
      %v2430 = vmul.f32 %v1941, %v2429
      %v2431 = vsel %vm2426, %v2430, 0.0
      %v2432 = vmul.f32 %v2414, 2.0
      %v2433 = vmax.f32 %v2432, 1.0
      %v2434 = vrcp.pop %v2433
      %v2435 = vmul.f32 %v2178, %v2434
      %v2436 = vsel %vm2426, %v2435, 0.0
      %v2437 = vadd.f32 %v2436, %v2431
      %v2438 = vmul.f32 %v2425, 10.0
      %v2439 = vadd.f32 %v2437, %v2438
      %v2440 = vmul.f32 %v2420, 10.0
      %v2441 = vadd.f32 %v2439, %v2440
      %vm2442 = vcmask 0
      %2443 = vst.msk [vmem:[#allocation10] sm:$0x1] %vm2442, %v2441
    $region17: #{loss_pallas.1} parent=1 // pred_fallthru
      _
    // Predicated region
    $region18: #{loss_pallas.1} parent=1 // pred_check
      _
    $region19: #{loss_pallas.1} parent=1 // pred_check_branch
      %2445 = sbr.rel (0) target = $region21
    $region20: #{loss_pallas.1} parent=1 // pred_region
      %s2447 = ssub.s32 16, 16
      %2448 = vsyncadd [#allocation11], %s2447
      %s2450 = sshll.u32 [#allocation10], 4
      %s2451 = int_to_ptr.vmem [resolvable:$true] %s2450
      %2453 = dma.vmem_to_hbm [thread:$0]  %s2451, 16, %s3, [#allocation11]
    $region21: #{loss_pallas.1} parent=1 // pred_fallthru
      _
    // Predicated region
    $region22: #{loss_pallas.1} parent=1 // pred_check
      _
    $region23: #{loss_pallas.1} parent=1 // pred_check_branch
      %2455 = sbr.rel (0) target = $region25
    $region24: #{loss_pallas.1} parent=1 // pred_region
      %2456 = dma.done [#allocation11], 16
    $region25: #{loss_pallas.1} parent=1 // pred_fallthru
      _
    %2457 = vsyncpa [#allocation11], 1

</llo_original>
